<compile_context>
chip_gen: v7x
topology: tpu7x:2x2x1
jax: 0.10.0
libtpu: 0.0.40
codegen_flags: <defaults>
</compile_context>

<pallas_src>
import jax
import jax.numpy as jnp
from jax.experimental import pallas as pl
from jax.experimental.pallas import tpu as pltpu

EPS = 1e-5
LANE = 128     # TPU lane width: per-relation blocks of w_cat are padded to this


def _gn_rows(x, w, b):
    """GroupNorm(num_groups=1) over the feature axis of [N, D].

    One fused cross-lane reduce: x and x*x are stacked along sublanes so the
    XLU does a single [2N, D] -> [2N, 1] sum; var uses the single-pass formula
    clamped at zero; rsqrt goes to the EUP.
    """
    n, d = x.shape
    both = jnp.concatenate([x, x * x], axis=0)               # [2N, D]
    s = jnp.sum(both, axis=-1, keepdims=True) * (1.0 / d)    # [2N, 1]
    mu = s[:n]                                               # E[x]
    ms = s[n:]                                               # E[x^2]
    var = jnp.maximum(ms - mu * mu, 0.0)
    return (x - mu) * jax.lax.rsqrt(var + EPS) * w + b


def m2m_kernel(feat_ref, afull_ref, wcat_ref, wctr2_ref, gn_ref, o_ref):
    feat = feat_ref[...]                     # [N, D] f32
    a_full = afull_ref[...]                  # [N, (K+1)*N]  (I | A_0 | ... | A_{K-1})

    N, D = feat.shape
    L = wcat_ref.shape[0]
    J = wcat_ref.shape[2] // LANE            # K + 1 relations (incl. ctr)

    for i in range(L):                       # fully unrolled, L = 4
        res = feat

        # One lane-dense MXU pass for ctr + all K aggregation linears.
        # Each relation occupies a full 128-lane tile (zero padded), so the
        # per-relation picks below are whole-vreg selects.
        big = jnp.dot(feat, wcat_ref[i],
                      preferred_element_type=jnp.float32)            # [N, J*128]

        # Restack per-relation messages along sublanes -> [J*N, 128].
        stack = jnp.concatenate(
            [big[:, j * LANE:(j + 1) * LANE] for j in range(J)], axis=0)

        # temp = ctr(feat) + sum_k A_k @ (feat @ W_k), as ONE matmul.
        # (exactly reproduces index_add_, duplicate edges included)
        temp = jnp.dot(a_full, stack,
                       preferred_element_type=jnp.float32)[:, :D]    # [N, D]

        gnp = gn_ref[i]                      # [4, D]: g1w | g1b | g2w | g2b
        x = _gn_rows(temp, gnp[0:1, :], gnp[1:2, :])
        x = jnp.maximum(x, 0.0)

        # ctr2: Linear(no bias) + GroupNorm, no activation.
        x = jnp.dot(x, wctr2_ref[i], preferred_element_type=jnp.float32)
        x = _gn_rows(x, gnp[2:3, :], gnp[3:4, :])

        # residual + ReLU
        feat = jnp.maximum(x + res, 0.0)

    o_ref[...] = feat


def m2m_prepare(adj, w_ctr, w_agg, w_ctr2, g1w, g1b, g2w, g2b):
    """Weight/graph-invariant preprocessing, hoisted out of the hot path.

    Call once per (graph, weights); the results are reused for every forward.
    """
    L, D, _ = w_ctr.shape
    K, N, _ = adj.shape
    J = K + 1

    # ctr + K aggregation weights, each zero-padded from D to 128 output lanes
    # so in-kernel per-relation slices are lane-tile aligned:
    #   w_cat[l, e, j*128 + d] = W_j[e, d]  (W_0 = ctr, W_j = agg[j-1]), d < D.
    w_all = jnp.concatenate([w_ctr[:, None], w_agg], axis=1)          # [L, J, D, D]
    w_pad = jnp.pad(w_all, ((0, 0), (0, 0), (0, 0), (0, LANE - D)))   # [L, J, D, 128]
    w_cat = jnp.transpose(w_pad, (0, 2, 1, 3)).reshape(L, D, J * LANE)

    # Layer-invariant combined adjacency [I | A_0 | ... | A_{K-1}] -> [N, J*N]
    blocks = jnp.concatenate([jnp.eye(N, dtype=jnp.float32)[None], adj], axis=0)
    a_full = jnp.transpose(blocks, (1, 0, 2)).reshape(N, J * N)

    # Merge the 4 GroupNorm parameter tensors -> [L, 4, D]
    gn = jnp.concatenate([g1w, g1b, g2w, g2b], axis=1)

    return a_full, w_cat, jnp.asarray(w_ctr2, jnp.float32), gn


@jax.jit
def m2m_apply(feat, a_full, w_cat, w_ctr2, gn):
    """Hot path: just the kernel call (all prep done in m2m_prepare)."""
    N, D = feat.shape
    L = w_cat.shape[0]
    J = w_cat.shape[2] // LANE

    flops = L * (2 * N * D * (J * LANE)          # fused relation linears
                 + 2 * N * (J * N) * LANE        # adjacency scatter matmul
                 + 2 * N * D * D)                # ctr2
    bytes_acc = 4 * (2 * feat.size + a_full.size + w_cat.size
                     + w_ctr2.size + gn.size)

    return pl.pallas_call(
        m2m_kernel,
        out_shape=jax.ShapeDtypeStruct((N, D), jnp.float32),
        in_specs=[pl.BlockSpec(memory_space=pltpu.MemorySpace.VMEM)] * 5,
        out_specs=pl.BlockSpec(memory_space=pltpu.MemorySpace.VMEM),
        input_output_aliases={0: 0},
        cost_estimate=pl.CostEstimate(
            flops=flops, transcendentals=L * 2 * N, bytes_accessed=bytes_acc),
    )(feat, a_full, w_cat, w_ctr2, gn)


def m2m_forward(feat, adj, w_ctr, w_agg, w_ctr2, g1w, g1b, g2w, g2b):
    """Convenience wrapper: prepare (once) + apply. In a real model, keep the
    m2m_prepare outputs around and call m2m_apply directly each step."""
    a_full, w_cat, w_ctr2_f, gn = m2m_prepare(
        adj, w_ctr, w_agg, w_ctr2, g1w, g1b, g2w, g2b)
    return m2m_apply(feat, a_full, w_cat, w_ctr2_f, gn)


# ---------------- pure-JAX reference (mirrors the PyTorch forward) -----------
def _gn_ref(x, w, b):
    mu = jnp.mean(x, axis=-1, keepdims=True)
    var = jnp.mean((x - mu) ** 2, axis=-1, keepdims=True)
    return (x - mu) * jax.lax.rsqrt(var + EPS) * w + b


def m2m_reference(feat, edges, w_ctr, w_agg, w_ctr2, g1w, g1b, g2w, g2b):
    res = feat
    L = w_ctr.shape[0]
    for i in range(L):
        temp = feat @ w_ctr[i]
        for k, (u, v) in enumerate(edges):
            msg = feat[v] @ w_agg[i, k]
            temp = temp.at[u].add(msg)          # index_add_
        x = _gn_ref(temp, g1w[i], g1b[i])
        x = jnp.maximum(x, 0.0)
        x = x @ w_ctr2[i]
        x = _gn_ref(x, g2w[i], g2b[i])
        x = jnp.maximum(x + res, 0.0)
        feat = x
        res = x
    return feat


if __name__ == "__main__":
    key = jax.random.PRNGKey(0)

    # config: n_map = 32 channels, num_scales = 2 -> keys pre0,suc0,pre1,suc1,
    # plus left, right => K = 6 aggregation relations; 4 fusion layers.
    N = 16          # number of lane nodes
    D = 32          # n_map
    NUM_SCALES = 2
    K = 2 * NUM_SCALES + 2
    L = 4           # fixed in the module (range(4))
    E = 8           # edges per relation

    keys = jax.random.split(key, 12)
    feat = jax.random.normal(keys[0], (N, D), jnp.float32)

    w_ctr = 0.1 * jax.random.normal(keys[1], (L, D, D), jnp.float32)
    w_agg = 0.1 * jax.random.normal(keys[2], (L, K, D, D), jnp.float32)
    w_ctr2 = 0.1 * jax.random.normal(keys[3], (L, D, D), jnp.float32)
    g1w = 1.0 + 0.05 * jax.random.normal(keys[4], (L, 1, D), jnp.float32)
    g1b = 0.05 * jax.random.normal(keys[5], (L, 1, D), jnp.float32)
    g2w = 1.0 + 0.05 * jax.random.normal(keys[6], (L, 1, D), jnp.float32)
    g2b = 0.05 * jax.random.normal(keys[7], (L, 1, D), jnp.float32)

    # deterministic random graph: (u, v) index lists per relation
    edge_keys = jax.random.split(keys[8], 2 * K)
    edges = []
    adj = jnp.zeros((K, N, N), jnp.float32)
    for k in range(K):
        u = jax.random.randint(edge_keys[2 * k], (E,), 0, N)
        v = jax.random.randint(edge_keys[2 * k + 1], (E,), 0, N)
        edges.append((u, v))
        adj = adj.at[k, u, v].add(1.0)   # dense scatter matrix for the kernel

    # One-time preprocessing (hoisted out of the hot path) ...
    a_full, w_cat, w_ctr2_f, gn = m2m_prepare(
        adj, w_ctr, w_agg, w_ctr2, g1w, g1b, g2w, g2b)
    a_full, w_cat, w_ctr2_f, gn = jax.block_until_ready(
        (a_full, w_cat, w_ctr2_f, gn))

    # ... then the hot-path call (pure kernel).
    out = m2m_apply(feat, a_full, w_cat, w_ctr2_f, gn)
    out = jax.block_until_ready(out)

    ref = m2m_reference(feat, edges, w_ctr, w_agg, w_ctr2, g1w, g1b, g2w, g2b)
    ref = jax.block_until_ready(ref)

    assert out.shape == (N, D) and out.dtype == jnp.float32
    if not jnp.allclose(out, ref, rtol=2e-3, atol=2e-3):
        raise AssertionError(
            f"mismatch: max abs err {float(jnp.max(jnp.abs(out - ref)))}")
    print("KERNEL_OK")
</pallas_src>

<mosaic_0001>
module attributes {stable_mosaic.version = 11 : i64} {
  func.func @m2m_kernel(%arg0: memref<16x32xf32, #tpu.memory_space<vmem>>, %arg1: memref<16x112xf32, #tpu.memory_space<vmem>>, %arg2: memref<4x32x896xf32, #tpu.memory_space<vmem>>, %arg3: memref<4x32x32xf32, #tpu.memory_space<vmem>>, %arg4: memref<4x4x32xf32, #tpu.memory_space<vmem>>, %arg5: memref<16x32xf32, #tpu.memory_space<vmem>>) attributes {dimension_semantics = [], scalar_prefetch = 0 : i64, scratch_operands = 0 : i64, tpu.core_type = #tpu.core_type<tc>} {
    %c0 = arith.constant 0 : index
    %c0_0 = arith.constant 0 : index
    %0 = vector.load %arg0[%c0, %c0_0] : memref<16x32xf32, #tpu.memory_space<vmem>>, vector<16x32xf32>
    %c0_1 = arith.constant 0 : index
    %c0_2 = arith.constant 0 : index
    %1 = vector.load %arg1[%c0_1, %c0_2] : memref<16x112xf32, #tpu.memory_space<vmem>>, vector<16x112xf32>
    %c0_3 = arith.constant 0 : index
    %c0_4 = arith.constant 0 : index
    %c0_5 = arith.constant 0 : index
    %2 = vector.load %arg2[%c0_3, %c0_4, %c0_5] : memref<4x32x896xf32, #tpu.memory_space<vmem>>, vector<1x32x896xf32>
    %3 = vector.shape_cast %2 : vector<1x32x896xf32> to vector<32x896xf32>
    %cst = arith.constant dense<0.000000e+00> : vector<16x896xf32>
    %4 = tpu.matmul %0, %3, %cst {dimension_numbers = #tpu.dot_dimension_numbers<[1], [0], [0], [1], [0, 0, 1, 1], [], []>} : vector<16x32xf32>, vector<32x896xf32>, vector<16x896xf32> -> vector<16x896xf32>
    %5 = vector.extract_strided_slice %4 {offsets = [0, 0], sizes = [16, 128], strides = [1, 1]} : vector<16x896xf32> to vector<16x128xf32>
    %6 = vector.extract_strided_slice %4 {offsets = [0, 128], sizes = [16, 128], strides = [1, 1]} : vector<16x896xf32> to vector<16x128xf32>
    %7 = vector.extract_strided_slice %4 {offsets = [0, 256], sizes = [16, 128], strides = [1, 1]} : vector<16x896xf32> to vector<16x128xf32>
    %8 = vector.extract_strided_slice %4 {offsets = [0, 384], sizes = [16, 128], strides = [1, 1]} : vector<16x896xf32> to vector<16x128xf32>
    %9 = vector.extract_strided_slice %4 {offsets = [0, 512], sizes = [16, 128], strides = [1, 1]} : vector<16x896xf32> to vector<16x128xf32>
    %10 = vector.extract_strided_slice %4 {offsets = [0, 640], sizes = [16, 128], strides = [1, 1]} : vector<16x896xf32> to vector<16x128xf32>
    %11 = vector.extract_strided_slice %4 {offsets = [0, 768], sizes = [16, 128], strides = [1, 1]} : vector<16x896xf32> to vector<16x128xf32>
    %12 = tpu.concatenate %5, %6, %7, %8, %9, %10, %11 in 0 : vector<16x128xf32>, vector<16x128xf32>, vector<16x128xf32>, vector<16x128xf32>, vector<16x128xf32>, vector<16x128xf32>, vector<16x128xf32> -> vector<112x128xf32>
    %cst_6 = arith.constant dense<0.000000e+00> : vector<16x128xf32>
    %13 = tpu.matmul %1, %12, %cst_6 {dimension_numbers = #tpu.dot_dimension_numbers<[1], [0], [0], [1], [0, 0, 1, 1], [], []>} : vector<16x112xf32>, vector<112x128xf32>, vector<16x128xf32> -> vector<16x128xf32>
    %14 = vector.extract_strided_slice %13 {offsets = [0, 0], sizes = [16, 32], strides = [1, 1]} : vector<16x128xf32> to vector<16x32xf32>
    %c0_7 = arith.constant 0 : index
    %c0_8 = arith.constant 0 : index
    %c0_9 = arith.constant 0 : index
    %15 = vector.load %arg4[%c0_7, %c0_8, %c0_9] : memref<4x4x32xf32, #tpu.memory_space<vmem>>, vector<1x4x32xf32>
    %16 = vector.shape_cast %15 : vector<1x4x32xf32> to vector<4x32xf32>
    %17 = vector.extract_strided_slice %16 {offsets = [0, 0], sizes = [1, 32], strides = [1, 1]} : vector<4x32xf32> to vector<1x32xf32>
    %18 = vector.extract_strided_slice %16 {offsets = [1, 0], sizes = [1, 32], strides = [1, 1]} : vector<4x32xf32> to vector<1x32xf32>
    %19 = arith.mulf %14, %14 : vector<16x32xf32>
    %20 = tpu.concatenate %14, %19 in 0 : vector<16x32xf32>, vector<16x32xf32> -> vector<32x32xf32>
    %cst_10 = arith.constant dense<0.000000e+00> : vector<32xf32>
    %21 = vector.multi_reduction <add>, %20, %cst_10 [1] : vector<32x32xf32> to vector<32xf32>
    %22 = vector.shape_cast %21 : vector<32xf32> to vector<32x1xf32>
    %cst_11 = arith.constant 3.125000e-02 : f32
    %23 = vector.broadcast %cst_11 : f32 to vector<32x1xf32>
    %24 = arith.mulf %22, %23 : vector<32x1xf32>
    %25 = vector.extract_strided_slice %24 {offsets = [0, 0], sizes = [16, 1], strides = [1, 1]} : vector<32x1xf32> to vector<16x1xf32>
    %26 = vector.extract_strided_slice %24 {offsets = [16, 0], sizes = [16, 1], strides = [1, 1]} : vector<32x1xf32> to vector<16x1xf32>
    %27 = arith.mulf %25, %25 : vector<16x1xf32>
    %28 = arith.subf %26, %27 : vector<16x1xf32>
    %cst_12 = arith.constant 0.000000e+00 : f32
    %29 = vector.broadcast %cst_12 : f32 to vector<16x1xf32>
    %30 = arith.maximumf %28, %29 : vector<16x1xf32>
    %31 = vector.broadcast %25 : vector<16x1xf32> to vector<16x32xf32>
    %32 = arith.subf %14, %31 : vector<16x32xf32>
    %cst_13 = arith.constant 9.99999974E-6 : f32
    %33 = vector.broadcast %cst_13 : f32 to vector<16x1xf32>
    %34 = arith.addf %30, %33 : vector<16x1xf32>
    %35 = math.rsqrt %34 : vector<16x1xf32>
    %36 = vector.broadcast %35 : vector<16x1xf32> to vector<16x32xf32>
    %37 = arith.mulf %32, %36 : vector<16x32xf32>
    %38 = vector.broadcast %17 : vector<1x32xf32> to vector<16x32xf32>
    %39 = arith.mulf %37, %38 : vector<16x32xf32>
    %40 = vector.broadcast %18 : vector<1x32xf32> to vector<16x32xf32>
    %41 = arith.addf %39, %40 : vector<16x32xf32>
    %cst_14 = arith.constant 0.000000e+00 : f32
    %42 = vector.broadcast %cst_14 : f32 to vector<16x32xf32>
    %43 = arith.maximumf %41, %42 : vector<16x32xf32>
    %c0_15 = arith.constant 0 : index
    %c0_16 = arith.constant 0 : index
    %c0_17 = arith.constant 0 : index
    %44 = vector.load %arg3[%c0_15, %c0_16, %c0_17] : memref<4x32x32xf32, #tpu.memory_space<vmem>>, vector<1x32x32xf32>
    %45 = vector.shape_cast %44 : vector<1x32x32xf32> to vector<32x32xf32>
    %cst_18 = arith.constant dense<0.000000e+00> : vector<16x32xf32>
    %46 = tpu.matmul %43, %45, %cst_18 {dimension_numbers = #tpu.dot_dimension_numbers<[1], [0], [0], [1], [0, 0, 1, 1], [], []>} : vector<16x32xf32>, vector<32x32xf32>, vector<16x32xf32> -> vector<16x32xf32>
    %47 = vector.extract_strided_slice %16 {offsets = [2, 0], sizes = [1, 32], strides = [1, 1]} : vector<4x32xf32> to vector<1x32xf32>
    %48 = vector.extract_strided_slice %16 {offsets = [3, 0], sizes = [1, 32], strides = [1, 1]} : vector<4x32xf32> to vector<1x32xf32>
    %49 = arith.mulf %46, %46 : vector<16x32xf32>
    %50 = tpu.concatenate %46, %49 in 0 : vector<16x32xf32>, vector<16x32xf32> -> vector<32x32xf32>
    %cst_19 = arith.constant dense<0.000000e+00> : vector<32xf32>
    %51 = vector.multi_reduction <add>, %50, %cst_19 [1] : vector<32x32xf32> to vector<32xf32>
    %52 = vector.shape_cast %51 : vector<32xf32> to vector<32x1xf32>
    %cst_20 = arith.constant 3.125000e-02 : f32
    %53 = vector.broadcast %cst_20 : f32 to vector<32x1xf32>
    %54 = arith.mulf %52, %53 : vector<32x1xf32>
    %55 = vector.extract_strided_slice %54 {offsets = [0, 0], sizes = [16, 1], strides = [1, 1]} : vector<32x1xf32> to vector<16x1xf32>
    %56 = vector.extract_strided_slice %54 {offsets = [16, 0], sizes = [16, 1], strides = [1, 1]} : vector<32x1xf32> to vector<16x1xf32>
    %57 = arith.mulf %55, %55 : vector<16x1xf32>
    %58 = arith.subf %56, %57 : vector<16x1xf32>
    %cst_21 = arith.constant 0.000000e+00 : f32
    %59 = vector.broadcast %cst_21 : f32 to vector<16x1xf32>
    %60 = arith.maximumf %58, %59 : vector<16x1xf32>
    %61 = vector.broadcast %55 : vector<16x1xf32> to vector<16x32xf32>
    %62 = arith.subf %46, %61 : vector<16x32xf32>
    %cst_22 = arith.constant 9.99999974E-6 : f32
    %63 = vector.broadcast %cst_22 : f32 to vector<16x1xf32>
    %64 = arith.addf %60, %63 : vector<16x1xf32>
    %65 = math.rsqrt %64 : vector<16x1xf32>
    %66 = vector.broadcast %65 : vector<16x1xf32> to vector<16x32xf32>
    %67 = arith.mulf %62, %66 : vector<16x32xf32>
    %68 = vector.broadcast %47 : vector<1x32xf32> to vector<16x32xf32>
    %69 = arith.mulf %67, %68 : vector<16x32xf32>
    %70 = vector.broadcast %48 : vector<1x32xf32> to vector<16x32xf32>
    %71 = arith.addf %69, %70 : vector<16x32xf32>
    %72 = arith.addf %71, %0 : vector<16x32xf32>
    %cst_23 = arith.constant 0.000000e+00 : f32
    %73 = vector.broadcast %cst_23 : f32 to vector<16x32xf32>
    %74 = arith.maximumf %72, %73 : vector<16x32xf32>
    %c1 = arith.constant 1 : index
    %c0_24 = arith.constant 0 : index
    %c0_25 = arith.constant 0 : index
    %75 = vector.load %arg2[%c1, %c0_24, %c0_25] : memref<4x32x896xf32, #tpu.memory_space<vmem>>, vector<1x32x896xf32>
    %76 = vector.shape_cast %75 : vector<1x32x896xf32> to vector<32x896xf32>
    %cst_26 = arith.constant dense<0.000000e+00> : vector<16x896xf32>
    %77 = tpu.matmul %74, %76, %cst_26 {dimension_numbers = #tpu.dot_dimension_numbers<[1], [0], [0], [1], [0, 0, 1, 1], [], []>} : vector<16x32xf32>, vector<32x896xf32>, vector<16x896xf32> -> vector<16x896xf32>
    %78 = vector.extract_strided_slice %77 {offsets = [0, 0], sizes = [16, 128], strides = [1, 1]} : vector<16x896xf32> to vector<16x128xf32>
    %79 = vector.extract_strided_slice %77 {offsets = [0, 128], sizes = [16, 128], strides = [1, 1]} : vector<16x896xf32> to vector<16x128xf32>
    %80 = vector.extract_strided_slice %77 {offsets = [0, 256], sizes = [16, 128], strides = [1, 1]} : vector<16x896xf32> to vector<16x128xf32>
    %81 = vector.extract_strided_slice %77 {offsets = [0, 384], sizes = [16, 128], strides = [1, 1]} : vector<16x896xf32> to vector<16x128xf32>
    %82 = vector.extract_strided_slice %77 {offsets = [0, 512], sizes = [16, 128], strides = [1, 1]} : vector<16x896xf32> to vector<16x128xf32>
    %83 = vector.extract_strided_slice %77 {offsets = [0, 640], sizes = [16, 128], strides = [1, 1]} : vector<16x896xf32> to vector<16x128xf32>
    %84 = vector.extract_strided_slice %77 {offsets = [0, 768], sizes = [16, 128], strides = [1, 1]} : vector<16x896xf32> to vector<16x128xf32>
    %85 = tpu.concatenate %78, %79, %80, %81, %82, %83, %84 in 0 : vector<16x128xf32>, vector<16x128xf32>, vector<16x128xf32>, vector<16x128xf32>, vector<16x128xf32>, vector<16x128xf32>, vector<16x128xf32> -> vector<112x128xf32>
    %cst_27 = arith.constant dense<0.000000e+00> : vector<16x128xf32>
    %86 = tpu.matmul %1, %85, %cst_27 {dimension_numbers = #tpu.dot_dimension_numbers<[1], [0], [0], [1], [0, 0, 1, 1], [], []>} : vector<16x112xf32>, vector<112x128xf32>, vector<16x128xf32> -> vector<16x128xf32>
    %87 = vector.extract_strided_slice %86 {offsets = [0, 0], sizes = [16, 32], strides = [1, 1]} : vector<16x128xf32> to vector<16x32xf32>
    %c1_28 = arith.constant 1 : index
    %c0_29 = arith.constant 0 : index
    %c0_30 = arith.constant 0 : index
    %88 = vector.load %arg4[%c1_28, %c0_29, %c0_30] : memref<4x4x32xf32, #tpu.memory_space<vmem>>, vector<1x4x32xf32>
    %89 = vector.shape_cast %88 : vector<1x4x32xf32> to vector<4x32xf32>
    %90 = vector.extract_strided_slice %89 {offsets = [0, 0], sizes = [1, 32], strides = [1, 1]} : vector<4x32xf32> to vector<1x32xf32>
    %91 = vector.extract_strided_slice %89 {offsets = [1, 0], sizes = [1, 32], strides = [1, 1]} : vector<4x32xf32> to vector<1x32xf32>
    %92 = arith.mulf %87, %87 : vector<16x32xf32>
    %93 = tpu.concatenate %87, %92 in 0 : vector<16x32xf32>, vector<16x32xf32> -> vector<32x32xf32>
    %cst_31 = arith.constant dense<0.000000e+00> : vector<32xf32>
    %94 = vector.multi_reduction <add>, %93, %cst_31 [1] : vector<32x32xf32> to vector<32xf32>
    %95 = vector.shape_cast %94 : vector<32xf32> to vector<32x1xf32>
    %cst_32 = arith.constant 3.125000e-02 : f32
    %96 = vector.broadcast %cst_32 : f32 to vector<32x1xf32>
    %97 = arith.mulf %95, %96 : vector<32x1xf32>
    %98 = vector.extract_strided_slice %97 {offsets = [0, 0], sizes = [16, 1], strides = [1, 1]} : vector<32x1xf32> to vector<16x1xf32>
    %99 = vector.extract_strided_slice %97 {offsets = [16, 0], sizes = [16, 1], strides = [1, 1]} : vector<32x1xf32> to vector<16x1xf32>
    %100 = arith.mulf %98, %98 : vector<16x1xf32>
    %101 = arith.subf %99, %100 : vector<16x1xf32>
    %cst_33 = arith.constant 0.000000e+00 : f32
    %102 = vector.broadcast %cst_33 : f32 to vector<16x1xf32>
    %103 = arith.maximumf %101, %102 : vector<16x1xf32>
    %104 = vector.broadcast %98 : vector<16x1xf32> to vector<16x32xf32>
    %105 = arith.subf %87, %104 : vector<16x32xf32>
    %cst_34 = arith.constant 9.99999974E-6 : f32
    %106 = vector.broadcast %cst_34 : f32 to vector<16x1xf32>
    %107 = arith.addf %103, %106 : vector<16x1xf32>
    %108 = math.rsqrt %107 : vector<16x1xf32>
    %109 = vector.broadcast %108 : vector<16x1xf32> to vector<16x32xf32>
    %110 = arith.mulf %105, %109 : vector<16x32xf32>
    %111 = vector.broadcast %90 : vector<1x32xf32> to vector<16x32xf32>
    %112 = arith.mulf %110, %111 : vector<16x32xf32>
    %113 = vector.broadcast %91 : vector<1x32xf32> to vector<16x32xf32>
    %114 = arith.addf %112, %113 : vector<16x32xf32>
    %cst_35 = arith.constant 0.000000e+00 : f32
    %115 = vector.broadcast %cst_35 : f32 to vector<16x32xf32>
    %116 = arith.maximumf %114, %115 : vector<16x32xf32>
    %c1_36 = arith.constant 1 : index
    %c0_37 = arith.constant 0 : index
    %c0_38 = arith.constant 0 : index
    %117 = vector.load %arg3[%c1_36, %c0_37, %c0_38] : memref<4x32x32xf32, #tpu.memory_space<vmem>>, vector<1x32x32xf32>
    %118 = vector.shape_cast %117 : vector<1x32x32xf32> to vector<32x32xf32>
    %cst_39 = arith.constant dense<0.000000e+00> : vector<16x32xf32>
    %119 = tpu.matmul %116, %118, %cst_39 {dimension_numbers = #tpu.dot_dimension_numbers<[1], [0], [0], [1], [0, 0, 1, 1], [], []>} : vector<16x32xf32>, vector<32x32xf32>, vector<16x32xf32> -> vector<16x32xf32>
    %120 = vector.extract_strided_slice %89 {offsets = [2, 0], sizes = [1, 32], strides = [1, 1]} : vector<4x32xf32> to vector<1x32xf32>
    %121 = vector.extract_strided_slice %89 {offsets = [3, 0], sizes = [1, 32], strides = [1, 1]} : vector<4x32xf32> to vector<1x32xf32>
    %122 = arith.mulf %119, %119 : vector<16x32xf32>
    %123 = tpu.concatenate %119, %122 in 0 : vector<16x32xf32>, vector<16x32xf32> -> vector<32x32xf32>
    %cst_40 = arith.constant dense<0.000000e+00> : vector<32xf32>
    %124 = vector.multi_reduction <add>, %123, %cst_40 [1] : vector<32x32xf32> to vector<32xf32>
    %125 = vector.shape_cast %124 : vector<32xf32> to vector<32x1xf32>
    %cst_41 = arith.constant 3.125000e-02 : f32
    %126 = vector.broadcast %cst_41 : f32 to vector<32x1xf32>
    %127 = arith.mulf %125, %126 : vector<32x1xf32>
    %128 = vector.extract_strided_slice %127 {offsets = [0, 0], sizes = [16, 1], strides = [1, 1]} : vector<32x1xf32> to vector<16x1xf32>
    %129 = vector.extract_strided_slice %127 {offsets = [16, 0], sizes = [16, 1], strides = [1, 1]} : vector<32x1xf32> to vector<16x1xf32>
    %130 = arith.mulf %128, %128 : vector<16x1xf32>
    %131 = arith.subf %129, %130 : vector<16x1xf32>
    %cst_42 = arith.constant 0.000000e+00 : f32
    %132 = vector.broadcast %cst_42 : f32 to vector<16x1xf32>
    %133 = arith.maximumf %131, %132 : vector<16x1xf32>
    %134 = vector.broadcast %128 : vector<16x1xf32> to vector<16x32xf32>
    %135 = arith.subf %119, %134 : vector<16x32xf32>
    %cst_43 = arith.constant 9.99999974E-6 : f32
    %136 = vector.broadcast %cst_43 : f32 to vector<16x1xf32>
    %137 = arith.addf %133, %136 : vector<16x1xf32>
    %138 = math.rsqrt %137 : vector<16x1xf32>
    %139 = vector.broadcast %138 : vector<16x1xf32> to vector<16x32xf32>
    %140 = arith.mulf %135, %139 : vector<16x32xf32>
    %141 = vector.broadcast %120 : vector<1x32xf32> to vector<16x32xf32>
    %142 = arith.mulf %140, %141 : vector<16x32xf32>
    %143 = vector.broadcast %121 : vector<1x32xf32> to vector<16x32xf32>
    %144 = arith.addf %142, %143 : vector<16x32xf32>
    %145 = arith.addf %144, %74 : vector<16x32xf32>
    %cst_44 = arith.constant 0.000000e+00 : f32
    %146 = vector.broadcast %cst_44 : f32 to vector<16x32xf32>
    %147 = arith.maximumf %145, %146 : vector<16x32xf32>
    %c2 = arith.constant 2 : index
    %c0_45 = arith.constant 0 : index
    %c0_46 = arith.constant 0 : index
    %148 = vector.load %arg2[%c2, %c0_45, %c0_46] : memref<4x32x896xf32, #tpu.memory_space<vmem>>, vector<1x32x896xf32>
    %149 = vector.shape_cast %148 : vector<1x32x896xf32> to vector<32x896xf32>
    %cst_47 = arith.constant dense<0.000000e+00> : vector<16x896xf32>
    %150 = tpu.matmul %147, %149, %cst_47 {dimension_numbers = #tpu.dot_dimension_numbers<[1], [0], [0], [1], [0, 0, 1, 1], [], []>} : vector<16x32xf32>, vector<32x896xf32>, vector<16x896xf32> -> vector<16x896xf32>
    %151 = vector.extract_strided_slice %150 {offsets = [0, 0], sizes = [16, 128], strides = [1, 1]} : vector<16x896xf32> to vector<16x128xf32>
    %152 = vector.extract_strided_slice %150 {offsets = [0, 128], sizes = [16, 128], strides = [1, 1]} : vector<16x896xf32> to vector<16x128xf32>
    %153 = vector.extract_strided_slice %150 {offsets = [0, 256], sizes = [16, 128], strides = [1, 1]} : vector<16x896xf32> to vector<16x128xf32>
    %154 = vector.extract_strided_slice %150 {offsets = [0, 384], sizes = [16, 128], strides = [1, 1]} : vector<16x896xf32> to vector<16x128xf32>
    %155 = vector.extract_strided_slice %150 {offsets = [0, 512], sizes = [16, 128], strides = [1, 1]} : vector<16x896xf32> to vector<16x128xf32>
    %156 = vector.extract_strided_slice %150 {offsets = [0, 640], sizes = [16, 128], strides = [1, 1]} : vector<16x896xf32> to vector<16x128xf32>
    %157 = vector.extract_strided_slice %150 {offsets = [0, 768], sizes = [16, 128], strides = [1, 1]} : vector<16x896xf32> to vector<16x128xf32>
    %158 = tpu.concatenate %151, %152, %153, %154, %155, %156, %157 in 0 : vector<16x128xf32>, vector<16x128xf32>, vector<16x128xf32>, vector<16x128xf32>, vector<16x128xf32>, vector<16x128xf32>, vector<16x128xf32> -> vector<112x128xf32>
    %cst_48 = arith.constant dense<0.000000e+00> : vector<16x128xf32>
    %159 = tpu.matmul %1, %158, %cst_48 {dimension_numbers = #tpu.dot_dimension_numbers<[1], [0], [0], [1], [0, 0, 1, 1], [], []>} : vector<16x112xf32>, vector<112x128xf32>, vector<16x128xf32> -> vector<16x128xf32>
    %160 = vector.extract_strided_slice %159 {offsets = [0, 0], sizes = [16, 32], strides = [1, 1]} : vector<16x128xf32> to vector<16x32xf32>
    %c2_49 = arith.constant 2 : index
    %c0_50 = arith.constant 0 : index
    %c0_51 = arith.constant 0 : index
    %161 = vector.load %arg4[%c2_49, %c0_50, %c0_51] : memref<4x4x32xf32, #tpu.memory_space<vmem>>, vector<1x4x32xf32>
    %162 = vector.shape_cast %161 : vector<1x4x32xf32> to vector<4x32xf32>
    %163 = vector.extract_strided_slice %162 {offsets = [0, 0], sizes = [1, 32], strides = [1, 1]} : vector<4x32xf32> to vector<1x32xf32>
    %164 = vector.extract_strided_slice %162 {offsets = [1, 0], sizes = [1, 32], strides = [1, 1]} : vector<4x32xf32> to vector<1x32xf32>
    %165 = arith.mulf %160, %160 : vector<16x32xf32>
    %166 = tpu.concatenate %160, %165 in 0 : vector<16x32xf32>, vector<16x32xf32> -> vector<32x32xf32>
    %cst_52 = arith.constant dense<0.000000e+00> : vector<32xf32>
    %167 = vector.multi_reduction <add>, %166, %cst_52 [1] : vector<32x32xf32> to vector<32xf32>
    %168 = vector.shape_cast %167 : vector<32xf32> to vector<32x1xf32>
    %cst_53 = arith.constant 3.125000e-02 : f32
    %169 = vector.broadcast %cst_53 : f32 to vector<32x1xf32>
    %170 = arith.mulf %168, %169 : vector<32x1xf32>
    %171 = vector.extract_strided_slice %170 {offsets = [0, 0], sizes = [16, 1], strides = [1, 1]} : vector<32x1xf32> to vector<16x1xf32>
    %172 = vector.extract_strided_slice %170 {offsets = [16, 0], sizes = [16, 1], strides = [1, 1]} : vector<32x1xf32> to vector<16x1xf32>
    %173 = arith.mulf %171, %171 : vector<16x1xf32>
    %174 = arith.subf %172, %173 : vector<16x1xf32>
    %cst_54 = arith.constant 0.000000e+00 : f32
    %175 = vector.broadcast %cst_54 : f32 to vector<16x1xf32>
    %176 = arith.maximumf %174, %175 : vector<16x1xf32>
    %177 = vector.broadcast %171 : vector<16x1xf32> to vector<16x32xf32>
    %178 = arith.subf %160, %177 : vector<16x32xf32>
    %cst_55 = arith.constant 9.99999974E-6 : f32
    %179 = vector.broadcast %cst_55 : f32 to vector<16x1xf32>
    %180 = arith.addf %176, %179 : vector<16x1xf32>
    %181 = math.rsqrt %180 : vector<16x1xf32>
    %182 = vector.broadcast %181 : vector<16x1xf32> to vector<16x32xf32>
    %183 = arith.mulf %178, %182 : vector<16x32xf32>
    %184 = vector.broadcast %163 : vector<1x32xf32> to vector<16x32xf32>
    %185 = arith.mulf %183, %184 : vector<16x32xf32>
    %186 = vector.broadcast %164 : vector<1x32xf32> to vector<16x32xf32>
    %187 = arith.addf %185, %186 : vector<16x32xf32>
    %cst_56 = arith.constant 0.000000e+00 : f32
    %188 = vector.broadcast %cst_56 : f32 to vector<16x32xf32>
    %189 = arith.maximumf %187, %188 : vector<16x32xf32>
    %c2_57 = arith.constant 2 : index
    %c0_58 = arith.constant 0 : index
    %c0_59 = arith.constant 0 : index
    %190 = vector.load %arg3[%c2_57, %c0_58, %c0_59] : memref<4x32x32xf32, #tpu.memory_space<vmem>>, vector<1x32x32xf32>
    %191 = vector.shape_cast %190 : vector<1x32x32xf32> to vector<32x32xf32>
    %cst_60 = arith.constant dense<0.000000e+00> : vector<16x32xf32>
    %192 = tpu.matmul %189, %191, %cst_60 {dimension_numbers = #tpu.dot_dimension_numbers<[1], [0], [0], [1], [0, 0, 1, 1], [], []>} : vector<16x32xf32>, vector<32x32xf32>, vector<16x32xf32> -> vector<16x32xf32>
    %193 = vector.extract_strided_slice %162 {offsets = [2, 0], sizes = [1, 32], strides = [1, 1]} : vector<4x32xf32> to vector<1x32xf32>
    %194 = vector.extract_strided_slice %162 {offsets = [3, 0], sizes = [1, 32], strides = [1, 1]} : vector<4x32xf32> to vector<1x32xf32>
    %195 = arith.mulf %192, %192 : vector<16x32xf32>
    %196 = tpu.concatenate %192, %195 in 0 : vector<16x32xf32>, vector<16x32xf32> -> vector<32x32xf32>
    %cst_61 = arith.constant dense<0.000000e+00> : vector<32xf32>
    %197 = vector.multi_reduction <add>, %196, %cst_61 [1] : vector<32x32xf32> to vector<32xf32>
    %198 = vector.shape_cast %197 : vector<32xf32> to vector<32x1xf32>
    %cst_62 = arith.constant 3.125000e-02 : f32
    %199 = vector.broadcast %cst_62 : f32 to vector<32x1xf32>
    %200 = arith.mulf %198, %199 : vector<32x1xf32>
    %201 = vector.extract_strided_slice %200 {offsets = [0, 0], sizes = [16, 1], strides = [1, 1]} : vector<32x1xf32> to vector<16x1xf32>
    %202 = vector.extract_strided_slice %200 {offsets = [16, 0], sizes = [16, 1], strides = [1, 1]} : vector<32x1xf32> to vector<16x1xf32>
    %203 = arith.mulf %201, %201 : vector<16x1xf32>
    %204 = arith.subf %202, %203 : vector<16x1xf32>
    %cst_63 = arith.constant 0.000000e+00 : f32
    %205 = vector.broadcast %cst_63 : f32 to vector<16x1xf32>
    %206 = arith.maximumf %204, %205 : vector<16x1xf32>
    %207 = vector.broadcast %201 : vector<16x1xf32> to vector<16x32xf32>
    %208 = arith.subf %192, %207 : vector<16x32xf32>
    %cst_64 = arith.constant 9.99999974E-6 : f32
    %209 = vector.broadcast %cst_64 : f32 to vector<16x1xf32>
    %210 = arith.addf %206, %209 : vector<16x1xf32>
    %211 = math.rsqrt %210 : vector<16x1xf32>
    %212 = vector.broadcast %211 : vector<16x1xf32> to vector<16x32xf32>
    %213 = arith.mulf %208, %212 : vector<16x32xf32>
    %214 = vector.broadcast %193 : vector<1x32xf32> to vector<16x32xf32>
    %215 = arith.mulf %213, %214 : vector<16x32xf32>
    %216 = vector.broadcast %194 : vector<1x32xf32> to vector<16x32xf32>
    %217 = arith.addf %215, %216 : vector<16x32xf32>
    %218 = arith.addf %217, %147 : vector<16x32xf32>
    %cst_65 = arith.constant 0.000000e+00 : f32
    %219 = vector.broadcast %cst_65 : f32 to vector<16x32xf32>
    %220 = arith.maximumf %218, %219 : vector<16x32xf32>
    %c3 = arith.constant 3 : index
    %c0_66 = arith.constant 0 : index
    %c0_67 = arith.constant 0 : index
    %221 = vector.load %arg2[%c3, %c0_66, %c0_67] : memref<4x32x896xf32, #tpu.memory_space<vmem>>, vector<1x32x896xf32>
    %222 = vector.shape_cast %221 : vector<1x32x896xf32> to vector<32x896xf32>
    %cst_68 = arith.constant dense<0.000000e+00> : vector<16x896xf32>
    %223 = tpu.matmul %220, %222, %cst_68 {dimension_numbers = #tpu.dot_dimension_numbers<[1], [0], [0], [1], [0, 0, 1, 1], [], []>} : vector<16x32xf32>, vector<32x896xf32>, vector<16x896xf32> -> vector<16x896xf32>
    %224 = vector.extract_strided_slice %223 {offsets = [0, 0], sizes = [16, 128], strides = [1, 1]} : vector<16x896xf32> to vector<16x128xf32>
    %225 = vector.extract_strided_slice %223 {offsets = [0, 128], sizes = [16, 128], strides = [1, 1]} : vector<16x896xf32> to vector<16x128xf32>
    %226 = vector.extract_strided_slice %223 {offsets = [0, 256], sizes = [16, 128], strides = [1, 1]} : vector<16x896xf32> to vector<16x128xf32>
    %227 = vector.extract_strided_slice %223 {offsets = [0, 384], sizes = [16, 128], strides = [1, 1]} : vector<16x896xf32> to vector<16x128xf32>
    %228 = vector.extract_strided_slice %223 {offsets = [0, 512], sizes = [16, 128], strides = [1, 1]} : vector<16x896xf32> to vector<16x128xf32>
    %229 = vector.extract_strided_slice %223 {offsets = [0, 640], sizes = [16, 128], strides = [1, 1]} : vector<16x896xf32> to vector<16x128xf32>
    %230 = vector.extract_strided_slice %223 {offsets = [0, 768], sizes = [16, 128], strides = [1, 1]} : vector<16x896xf32> to vector<16x128xf32>
    %231 = tpu.concatenate %224, %225, %226, %227, %228, %229, %230 in 0 : vector<16x128xf32>, vector<16x128xf32>, vector<16x128xf32>, vector<16x128xf32>, vector<16x128xf32>, vector<16x128xf32>, vector<16x128xf32> -> vector<112x128xf32>
    %cst_69 = arith.constant dense<0.000000e+00> : vector<16x128xf32>
    %232 = tpu.matmul %1, %231, %cst_69 {dimension_numbers = #tpu.dot_dimension_numbers<[1], [0], [0], [1], [0, 0, 1, 1], [], []>} : vector<16x112xf32>, vector<112x128xf32>, vector<16x128xf32> -> vector<16x128xf32>
    %233 = vector.extract_strided_slice %232 {offsets = [0, 0], sizes = [16, 32], strides = [1, 1]} : vector<16x128xf32> to vector<16x32xf32>
    %c3_70 = arith.constant 3 : index
    %c0_71 = arith.constant 0 : index
    %c0_72 = arith.constant 0 : index
    %234 = vector.load %arg4[%c3_70, %c0_71, %c0_72] : memref<4x4x32xf32, #tpu.memory_space<vmem>>, vector<1x4x32xf32>
    %235 = vector.shape_cast %234 : vector<1x4x32xf32> to vector<4x32xf32>
    %236 = vector.extract_strided_slice %235 {offsets = [0, 0], sizes = [1, 32], strides = [1, 1]} : vector<4x32xf32> to vector<1x32xf32>
    %237 = vector.extract_strided_slice %235 {offsets = [1, 0], sizes = [1, 32], strides = [1, 1]} : vector<4x32xf32> to vector<1x32xf32>
    %238 = arith.mulf %233, %233 : vector<16x32xf32>
    %239 = tpu.concatenate %233, %238 in 0 : vector<16x32xf32>, vector<16x32xf32> -> vector<32x32xf32>
    %cst_73 = arith.constant dense<0.000000e+00> : vector<32xf32>
    %240 = vector.multi_reduction <add>, %239, %cst_73 [1] : vector<32x32xf32> to vector<32xf32>
    %241 = vector.shape_cast %240 : vector<32xf32> to vector<32x1xf32>
    %cst_74 = arith.constant 3.125000e-02 : f32
    %242 = vector.broadcast %cst_74 : f32 to vector<32x1xf32>
    %243 = arith.mulf %241, %242 : vector<32x1xf32>
    %244 = vector.extract_strided_slice %243 {offsets = [0, 0], sizes = [16, 1], strides = [1, 1]} : vector<32x1xf32> to vector<16x1xf32>
    %245 = vector.extract_strided_slice %243 {offsets = [16, 0], sizes = [16, 1], strides = [1, 1]} : vector<32x1xf32> to vector<16x1xf32>
    %246 = arith.mulf %244, %244 : vector<16x1xf32>
    %247 = arith.subf %245, %246 : vector<16x1xf32>
    %cst_75 = arith.constant 0.000000e+00 : f32
    %248 = vector.broadcast %cst_75 : f32 to vector<16x1xf32>
    %249 = arith.maximumf %247, %248 : vector<16x1xf32>
    %250 = vector.broadcast %244 : vector<16x1xf32> to vector<16x32xf32>
    %251 = arith.subf %233, %250 : vector<16x32xf32>
    %cst_76 = arith.constant 9.99999974E-6 : f32
    %252 = vector.broadcast %cst_76 : f32 to vector<16x1xf32>
    %253 = arith.addf %249, %252 : vector<16x1xf32>
    %254 = math.rsqrt %253 : vector<16x1xf32>
    %255 = vector.broadcast %254 : vector<16x1xf32> to vector<16x32xf32>
    %256 = arith.mulf %251, %255 : vector<16x32xf32>
    %257 = vector.broadcast %236 : vector<1x32xf32> to vector<16x32xf32>
    %258 = arith.mulf %256, %257 : vector<16x32xf32>
    %259 = vector.broadcast %237 : vector<1x32xf32> to vector<16x32xf32>
    %260 = arith.addf %258, %259 : vector<16x32xf32>
    %cst_77 = arith.constant 0.000000e+00 : f32
    %261 = vector.broadcast %cst_77 : f32 to vector<16x32xf32>
    %262 = arith.maximumf %260, %261 : vector<16x32xf32>
    %c3_78 = arith.constant 3 : index
    %c0_79 = arith.constant 0 : index
    %c0_80 = arith.constant 0 : index
    %263 = vector.load %arg3[%c3_78, %c0_79, %c0_80] : memref<4x32x32xf32, #tpu.memory_space<vmem>>, vector<1x32x32xf32>
    %264 = vector.shape_cast %263 : vector<1x32x32xf32> to vector<32x32xf32>
    %cst_81 = arith.constant dense<0.000000e+00> : vector<16x32xf32>
    %265 = tpu.matmul %262, %264, %cst_81 {dimension_numbers = #tpu.dot_dimension_numbers<[1], [0], [0], [1], [0, 0, 1, 1], [], []>} : vector<16x32xf32>, vector<32x32xf32>, vector<16x32xf32> -> vector<16x32xf32>
    %266 = vector.extract_strided_slice %235 {offsets = [2, 0], sizes = [1, 32], strides = [1, 1]} : vector<4x32xf32> to vector<1x32xf32>
    %267 = vector.extract_strided_slice %235 {offsets = [3, 0], sizes = [1, 32], strides = [1, 1]} : vector<4x32xf32> to vector<1x32xf32>
    %268 = arith.mulf %265, %265 : vector<16x32xf32>
    %269 = tpu.concatenate %265, %268 in 0 : vector<16x32xf32>, vector<16x32xf32> -> vector<32x32xf32>
    %cst_82 = arith.constant dense<0.000000e+00> : vector<32xf32>
    %270 = vector.multi_reduction <add>, %269, %cst_82 [1] : vector<32x32xf32> to vector<32xf32>
    %271 = vector.shape_cast %270 : vector<32xf32> to vector<32x1xf32>
    %cst_83 = arith.constant 3.125000e-02 : f32
    %272 = vector.broadcast %cst_83 : f32 to vector<32x1xf32>
    %273 = arith.mulf %271, %272 : vector<32x1xf32>
    %274 = vector.extract_strided_slice %273 {offsets = [0, 0], sizes = [16, 1], strides = [1, 1]} : vector<32x1xf32> to vector<16x1xf32>
    %275 = vector.extract_strided_slice %273 {offsets = [16, 0], sizes = [16, 1], strides = [1, 1]} : vector<32x1xf32> to vector<16x1xf32>
    %276 = arith.mulf %274, %274 : vector<16x1xf32>
    %277 = arith.subf %275, %276 : vector<16x1xf32>
    %cst_84 = arith.constant 0.000000e+00 : f32
    %278 = vector.broadcast %cst_84 : f32 to vector<16x1xf32>
    %279 = arith.maximumf %277, %278 : vector<16x1xf32>
    %280 = vector.broadcast %274 : vector<16x1xf32> to vector<16x32xf32>
    %281 = arith.subf %265, %280 : vector<16x32xf32>
    %cst_85 = arith.constant 9.99999974E-6 : f32
    %282 = vector.broadcast %cst_85 : f32 to vector<16x1xf32>
    %283 = arith.addf %279, %282 : vector<16x1xf32>
    %284 = math.rsqrt %283 : vector<16x1xf32>
    %285 = vector.broadcast %284 : vector<16x1xf32> to vector<16x32xf32>
    %286 = arith.mulf %281, %285 : vector<16x32xf32>
    %287 = vector.broadcast %266 : vector<1x32xf32> to vector<16x32xf32>
    %288 = arith.mulf %286, %287 : vector<16x32xf32>
    %289 = vector.broadcast %267 : vector<1x32xf32> to vector<16x32xf32>
    %290 = arith.addf %288, %289 : vector<16x32xf32>
    %291 = arith.addf %290, %220 : vector<16x32xf32>
    %cst_86 = arith.constant 0.000000e+00 : f32
    %292 = vector.broadcast %cst_86 : f32 to vector<16x32xf32>
    %293 = arith.maximumf %291, %292 : vector<16x32xf32>
    %c0_87 = arith.constant 0 : index
    %c0_88 = arith.constant 0 : index
    %294 = vector.load %arg5[%c0_87, %c0_88] : memref<16x32xf32, #tpu.memory_space<vmem>>, vector<16x32xf32>
    tpu.vector_store %arg5[%c0_87, %c0_88], %293 {strides = array<i32>} : memref<16x32xf32, #tpu.memory_space<vmem>>, vector<16x32xf32>,
    return
  }
}

</mosaic_0001>

<llo_original>
// kernel: m2m_apply.1
$region0: #{m2m_apply.1}
  #allocation0 [shape = 'u32[]', space=smem, size = 0x4, offset = 0x4, fixed_abs, tag = 'smem constant byte address 0x4 - core index']
  #allocation1 [shape = 'u32[144,128]{1,0:T(1,128)}', space=vmem, size = 0x12000, scoped, tag = 'internal scratch']
  %s0 = inlined_call_operand.hbm [shape: f32[16,32], index: 0, kind: input, shape index: {}, may-alias: {0,5}]
  %s1 = inlined_call_operand.vmem [shape: f32[16,112], index: 1, kind: input, shape index: {}]
  %s2 = inlined_call_operand.hbm [shape: f32[4,32,896], index: 2, kind: input, shape index: {}]
  %s3 = inlined_call_operand.hbm [shape: f32[4,32,32], index: 3, kind: input, shape index: {}]
  %s4 = inlined_call_operand.vmem [shape: f32[4,4,32], index: 4, kind: input, shape index: {}]
  %s5 = inlined_call_operand.hbm [shape: f32[16,32], index: 5, kind: output, shape index: {}, may-alias: {0,5}]
  %s6 = sld [smem:[#allocation0]]
  $region42: #{m2m_apply.1} parent=0
    _
  %s8 = ssub.s32 1, %s6
  %s9 = scalar_select 0, %s8, %s6
  $region1: #{m2m_apply.1} parent=0
    #allocation2 [shape = 'u8[8192]{0}', space=vmem, size = 0x2000, scoped, tag = 'input window, operand 0, single buffered']
    #allocation3 [shape = 's32[1]{0}', space=sflag, size = 0x4, scoped, tag = 'scoped memory for m2m_apply.1']
    #allocation4 [shape = 's32[1]{0}', space=sflag, size = 0x4, scoped, tag = 'scoped memory for m2m_apply.1']
    #allocation5 [shape = 'u8[458752]{0}', space=vmem, size = 0x70000, scoped, tag = 'input window, operand 2, single buffered']
    #allocation6 [shape = 's32[1]{0}', space=sflag, size = 0x4, scoped, tag = 'scoped memory for m2m_apply.1']
    #allocation7 [shape = 'u8[65536]{0}', space=vmem, size = 0x10000, scoped, tag = 'input window, operand 3, single buffered']
    #allocation8 [shape = 'u8[8192]{0}', space=vmem, size = 0x2000, scoped, tag = 'output window, operand 0, single buffered']
    %10 = vsyncpa [#allocation3], 0
    %11 = vsyncpa [#allocation6], 0
    %12 = vsyncpa [#allocation4], 0
    // Predicated region
    $region2: #{m2m_apply.1} parent=1 // pred_check
      _
    $region3: #{m2m_apply.1} parent=1 // pred_check_branch
      %14 = sbr.rel (0) target = $region5
    $region4: #{m2m_apply.1} parent=1 // pred_region
      %s16 = ssub.s32 256, 256
      %17 = vsyncadd [#allocation3], %s16
      %s18 = sshll.u32 [#allocation2], 4
      %s19 = int_to_ptr.vmem [resolvable:$true] %s18
      %24 = dma.hbm_to_vmem [thread:$0]  %s0, 256, %s19, [#allocation3], 128, 128, 8
    $region5: #{m2m_apply.1} parent=1 // pred_fallthru
      _
    // Predicated region
    $region6: #{m2m_apply.1} parent=1 // pred_check
      _
    $region7: #{m2m_apply.1} parent=1 // pred_check_branch
      %26 = sbr.rel (0) target = $region9
    $region8: #{m2m_apply.1} parent=1 // pred_region
      _
    $region9: #{m2m_apply.1} parent=1 // pred_fallthru
      _
    // Predicated region
    $region10: #{m2m_apply.1} parent=1 // pred_check
      _
    $region11: #{m2m_apply.1} parent=1 // pred_check_branch
      %28 = sbr.rel (0) target = $region13
    $region12: #{m2m_apply.1} parent=1 // pred_region
      %s30 = ssub.s32 14336, 14336
      %31 = vsyncadd [#allocation6], %s30
      %s32 = sshll.u32 [#allocation5], 4
      %s33 = int_to_ptr.vmem [resolvable:$true] %s32
      %38 = dma.hbm_to_vmem [thread:$0]  %s2, 14336, %s33, [#allocation6], 896, 896, 56
    $region13: #{m2m_apply.1} parent=1 // pred_fallthru
      _
    // Predicated region
    $region14: #{m2m_apply.1} parent=1 // pred_check
      _
    $region15: #{m2m_apply.1} parent=1 // pred_check_branch
      %40 = sbr.rel (0) target = $region17
    $region16: #{m2m_apply.1} parent=1 // pred_region
      %s42 = ssub.s32 2048, 2048
      %43 = vsyncadd [#allocation6], %s42
      %s44 = sshll.u32 [#allocation7], 4
      %s45 = int_to_ptr.vmem [resolvable:$true] %s44
      %50 = dma.hbm_to_vmem [thread:$0]  %s3, 2048, %s45, [#allocation6], 128, 128, 8
    $region17: #{m2m_apply.1} parent=1 // pred_fallthru
      _
    // Predicated region
    $region18: #{m2m_apply.1} parent=1 // pred_check
      _
    $region19: #{m2m_apply.1} parent=1 // pred_check_branch
      %52 = sbr.rel (0) target = $region21
    $region20: #{m2m_apply.1} parent=1 // pred_region
      _
    $region21: #{m2m_apply.1} parent=1 // pred_fallthru
      _
    // Predicated region
    $region22: #{m2m_apply.1} parent=1 // pred_check
      _
    $region23: #{m2m_apply.1} parent=1 // pred_check_branch
      %54 = sbr.rel (0) target = $region25
    $region24: #{m2m_apply.1} parent=1 // pred_region
      %55 = dma.done [#allocation3], 256
    $region25: #{m2m_apply.1} parent=1 // pred_fallthru
      _
    // Predicated region
    $region26: #{m2m_apply.1} parent=1 // pred_check
      _
    $region27: #{m2m_apply.1} parent=1 // pred_check_branch
      %57 = sbr.rel (0) target = $region29
    $region28: #{m2m_apply.1} parent=1 // pred_region
      %58 = dma.done [#allocation6], 14336
    $region29: #{m2m_apply.1} parent=1 // pred_fallthru
      _
    // Predicated region
    $region30: #{m2m_apply.1} parent=1 // pred_check
      _
    $region31: #{m2m_apply.1} parent=1 // pred_check_branch
      %60 = sbr.rel (0) target = $region33
    $region32: #{m2m_apply.1} parent=1 // pred_region
      %61 = dma.done [#allocation6], 2048
    $region33: #{m2m_apply.1} parent=1 // pred_fallthru
      _
    %v62 = vld [vmem:[#allocation2] sm:$0xff]
    %v63 = vld [vmem:[#allocation2 + $0x8] sm:$0xff]
    %v64 = vld [vmem:[%s1] sm:$0xff]
    %v65 = vld [vmem:[%s1 + $0x8] sm:$0xff]
    %v66 = vld [vmem:[#allocation5] sm:$0xff]
    %v67 = vld [vmem:[#allocation5 + $0x8] sm:$0xff]
    %v68 = vld [vmem:[#allocation5 + $0x10] sm:$0xff]
    %v69 = vld [vmem:[#allocation5 + $0x18] sm:$0xff]
    %v70 = vld [vmem:[#allocation5 + $0x20] sm:$0xff]
    %v71 = vld [vmem:[#allocation5 + $0x28] sm:$0xff]
    %v72 = vld [vmem:[#allocation5 + $0x30] sm:$0xff]
    %v73 = vld [vmem:[#allocation5 + $0x38] sm:$0xff]
    %v74 = vld [vmem:[#allocation5 + $0x40] sm:$0xff]
    %v75 = vld [vmem:[#allocation5 + $0x48] sm:$0xff]
    %v76 = vld [vmem:[#allocation5 + $0x50] sm:$0xff]
    %v77 = vld [vmem:[#allocation5 + $0x58] sm:$0xff]
    %v78 = vld [vmem:[#allocation5 + $0x60] sm:$0xff]
    %v79 = vld [vmem:[#allocation5 + $0x68] sm:$0xff]
    %v80 = vld [vmem:[#allocation5 + $0x70] sm:$0xff]
    %v81 = vld [vmem:[#allocation5 + $0x78] sm:$0xff]
    %v82 = vld [vmem:[#allocation5 + $0x80] sm:$0xff]
    %v83 = vld [vmem:[#allocation5 + $0x88] sm:$0xff]
    %v84 = vld [vmem:[#allocation5 + $0x90] sm:$0xff]
    %v85 = vld [vmem:[#allocation5 + $0x98] sm:$0xff]
    %v86 = vld [vmem:[#allocation5 + $0xa0] sm:$0xff]
    %v87 = vld [vmem:[#allocation5 + $0xa8] sm:$0xff]
    %v88 = vld [vmem:[#allocation5 + $0xb0] sm:$0xff]
    %v89 = vld [vmem:[#allocation5 + $0xb8] sm:$0xff]
    %v90 = vld [vmem:[#allocation5 + $0xc0] sm:$0xff]
    %v91 = vld [vmem:[#allocation5 + $0xc8] sm:$0xff]
    %v92 = vld [vmem:[#allocation5 + $0xd0] sm:$0xff]
    %v93 = vld [vmem:[#allocation5 + $0xd8] sm:$0xff]
    %vm94 = vcmask 261120
    %v96 = vsel %vm94, %v62, 0
    %v99 = vsel %vm94, %v63, 0
    %101 = vmatprep.subr.mxu0 %v67
    %102 = vmatpush1.msra.mxu0 %v66
    %103 = vmatprep.subr.mxu0 %v74
    %104 = vmatpush1.msra.mxu0 %v73
    %105 = vmatprep.subr.mxu0 %v81
    %106 = vmatpush1.msra.mxu0 %v80
    %107 = vmatprep.subr.mxu0 %v88
    %108 = vmatpush1.msra.mxu0 %v87
    %109 = vmatprep.subr.mxu0 0.0
    %110 = vmatpush1.msra.mxu0 0.0
    %111 = vmatprep.subr.mxu0 0.0
    %112 = vmatpush1.msra.mxu0 0.0
    %113 = vmatprep.subr.mxu0 0.0
    %114 = vmatpush1.msra.mxu0 0.0
    %115 = vmatprep.subr.mxu0 0.0
    %116 = vmatpush1.msra.mxu0 0.0
    %117 = vmatprep.subr.mxu0 0.0
    %118 = vmatpush1.msra.mxu0 0.0
    %119 = vmatprep.subr.mxu0 0.0
    %120 = vmatpush1.msra.mxu0 0.0
    %121 = vmatprep.subr.mxu0 0.0
    %122 = vmatpush1.msra.mxu0 0.0
    %123 = vmatprep.subr.mxu0 0.0
    %124 = vmatpush1.msra.mxu0 0.0
    %125 = vmatprep.subr.mxu0 0.0
    %126 = vmatpush1.msra.mxu0 0.0
    %127 = vmatprep.subr.mxu0 0.0
    %128 = vmatpush1.msra.mxu0 0.0
    %129 = vmatprep.subr.mxu0 0.0
    %130 = vmatpush1.msra.mxu0 0.0
    %131 = vmatprep.subr.mxu0 0.0
    %132 = vmatpush1.msra.mxu0 0.0
    %133 = vmatprep.subr.mxu0 0.0
    %134 = vmatpush1.msra.mxu0 0.0
    %135 = vmatprep.subr.mxu0 0.0
    %136 = vmatpush1.msra.mxu0 0.0
    %137 = vmatprep.subr.mxu0 0.0
    %138 = vmatpush1.msra.mxu0 0.0
    %139 = vmatprep.subr.mxu0 0.0
    %140 = vmatpush1.msra.mxu0 0.0
    %141 = vmatprep.subr.mxu0 0.0
    %142 = vmatpush1.msra.mxu0 0.0
    %143 = vmatprep.subr.mxu0 0.0
    %144 = vmatpush1.msra.mxu0 0.0
    %145 = vmatprep.subr.mxu0 0.0
    %146 = vmatpush1.msra.mxu0 0.0
    %147 = vmatprep.subr.mxu0 0.0
    %148 = vmatpush1.msra.mxu0 0.0
    %149 = vmatprep.subr.mxu0 0.0
    %150 = vmatpush1.msra.mxu0 0.0
    %151 = vmatprep.subr.mxu0 0.0
    %152 = vmatpush1.msra.mxu0 0.0
    %153 = vmatprep.subr.mxu0 0.0
    %154 = vmatpush1.msra.mxu0 0.0
    %155 = vmatprep.subr.mxu0 0.0
    %156 = vmatpush1.msra.mxu0 0.0
    %157 = vmatprep.subr.mxu0 0.0
    %158 = vmatpush1.msra.mxu0 0.0
    %159 = vmatprep.subr.mxu0 0.0
    %160 = vmatpush1.msra.mxu0 0.0
    %161 = vmatprep.subr.mxu0 0.0
    %162 = vmatpush1.msra.mxu0 0.0
    %163 = vmatprep.subr.mxu0 0.0
    %164 = vmatpush1.msra.mxu0 0.0
    %165 = vmatprep.mubr.f32.mxu0 0.0
    %166 = vmatmul.mubr.f32.gmra.mrb[0].mxu0 %v96
    %v167 = vpop.f32.mrb[0].mxu0
    %v168 = vadd.f32 0.0, %v167
    %v169 = vpop.f32.mrb[0].mxu0
    %v170 = vadd.f32 0.0, %v169
    %171 = vmatprep.mubr.f32.mxu0 0.0
    %172 = vmatmul.mubr.f32.gmra.mrb[0].mxu0 %v99
    %v173 = vpop.f32.mrb[0].mxu0
    %v174 = vadd.f32 0.0, %v173
    %v175 = vpop.f32.mrb[0].mxu0
    %v176 = vadd.f32 0.0, %v175
    %177 = vdwg.mxu0
    %178 = vmatprep.subr.mxu0 %v69
    %179 = vmatpush1.msra.mxu0 %v68
    %180 = vmatprep.subr.mxu0 %v76
    %181 = vmatpush1.msra.mxu0 %v75
    %182 = vmatprep.subr.mxu0 %v83
    %183 = vmatpush1.msra.mxu0 %v82
    %184 = vmatprep.subr.mxu0 %v90
    %185 = vmatpush1.msra.mxu0 %v89
    %186 = vmatprep.subr.mxu0 0.0
    %187 = vmatpush1.msra.mxu0 0.0
    %188 = vmatprep.subr.mxu0 0.0
    %189 = vmatpush1.msra.mxu0 0.0
    %190 = vmatprep.subr.mxu0 0.0
    %191 = vmatpush1.msra.mxu0 0.0
    %192 = vmatprep.subr.mxu0 0.0
    %193 = vmatpush1.msra.mxu0 0.0
    %194 = vmatprep.subr.mxu0 0.0
    %195 = vmatpush1.msra.mxu0 0.0
    %196 = vmatprep.subr.mxu0 0.0
    %197 = vmatpush1.msra.mxu0 0.0
    %198 = vmatprep.subr.mxu0 0.0
    %199 = vmatpush1.msra.mxu0 0.0
    %200 = vmatprep.subr.mxu0 0.0
    %201 = vmatpush1.msra.mxu0 0.0
    %202 = vmatprep.subr.mxu0 0.0
    %203 = vmatpush1.msra.mxu0 0.0
    %204 = vmatprep.subr.mxu0 0.0
    %205 = vmatpush1.msra.mxu0 0.0
    %206 = vmatprep.subr.mxu0 0.0
    %207 = vmatpush1.msra.mxu0 0.0
    %208 = vmatprep.subr.mxu0 0.0
    %209 = vmatpush1.msra.mxu0 0.0
    %210 = vmatprep.subr.mxu0 0.0
    %211 = vmatpush1.msra.mxu0 0.0
    %212 = vmatprep.subr.mxu0 0.0
    %213 = vmatpush1.msra.mxu0 0.0
    %214 = vmatprep.subr.mxu0 0.0
    %215 = vmatpush1.msra.mxu0 0.0
    %216 = vmatprep.subr.mxu0 0.0
    %217 = vmatpush1.msra.mxu0 0.0
    %218 = vmatprep.subr.mxu0 0.0
    %219 = vmatpush1.msra.mxu0 0.0
    %220 = vmatprep.subr.mxu0 0.0
    %221 = vmatpush1.msra.mxu0 0.0
    %222 = vmatprep.subr.mxu0 0.0
    %223 = vmatpush1.msra.mxu0 0.0
    %224 = vmatprep.subr.mxu0 0.0
    %225 = vmatpush1.msra.mxu0 0.0
    %226 = vmatprep.subr.mxu0 0.0
    %227 = vmatpush1.msra.mxu0 0.0
    %228 = vmatprep.subr.mxu0 0.0
    %229 = vmatpush1.msra.mxu0 0.0
    %230 = vmatprep.subr.mxu0 0.0
    %231 = vmatpush1.msra.mxu0 0.0
    %232 = vmatprep.subr.mxu0 0.0
    %233 = vmatpush1.msra.mxu0 0.0
    %234 = vmatprep.subr.mxu0 0.0
    %235 = vmatpush1.msra.mxu0 0.0
    %236 = vmatprep.subr.mxu0 0.0
    %237 = vmatpush1.msra.mxu0 0.0
    %238 = vmatprep.subr.mxu0 0.0
    %239 = vmatpush1.msra.mxu0 0.0
    %240 = vmatprep.subr.mxu0 0.0
    %241 = vmatpush1.msra.mxu0 0.0
    %242 = vmatprep.mubr.f32.mxu0 0.0
    %243 = vmatmul.mubr.f32.gmra.mrb[0].mxu0 %v96
    %v244 = vpop.f32.mrb[0].mxu0
    %v245 = vadd.f32 0.0, %v244
    %v246 = vpop.f32.mrb[0].mxu0
    %v247 = vadd.f32 0.0, %v246
    %248 = vmatprep.mubr.f32.mxu0 0.0
    %249 = vmatmul.mubr.f32.gmra.mrb[0].mxu0 %v99
    %v250 = vpop.f32.mrb[0].mxu0
    %v251 = vadd.f32 0.0, %v250
    %v252 = vpop.f32.mrb[0].mxu0
    %v253 = vadd.f32 0.0, %v252
    %254 = vdwg.mxu0
    %255 = vmatprep.subr.mxu0 %v71
    %256 = vmatpush1.msra.mxu0 %v70
    %257 = vmatprep.subr.mxu0 %v78
    %258 = vmatpush1.msra.mxu0 %v77
    %259 = vmatprep.subr.mxu0 %v85
    %260 = vmatpush1.msra.mxu0 %v84
    %261 = vmatprep.subr.mxu0 %v92
    %262 = vmatpush1.msra.mxu0 %v91
    %263 = vmatprep.subr.mxu0 0.0
    %264 = vmatpush1.msra.mxu0 0.0
    %265 = vmatprep.subr.mxu0 0.0
    %266 = vmatpush1.msra.mxu0 0.0
    %267 = vmatprep.subr.mxu0 0.0
    %268 = vmatpush1.msra.mxu0 0.0
    %269 = vmatprep.subr.mxu0 0.0
    %270 = vmatpush1.msra.mxu0 0.0
    %271 = vmatprep.subr.mxu0 0.0
    %272 = vmatpush1.msra.mxu0 0.0
    %273 = vmatprep.subr.mxu0 0.0
    %274 = vmatpush1.msra.mxu0 0.0
    %275 = vmatprep.subr.mxu0 0.0
    %276 = vmatpush1.msra.mxu0 0.0
    %277 = vmatprep.subr.mxu0 0.0
    %278 = vmatpush1.msra.mxu0 0.0
    %279 = vmatprep.subr.mxu0 0.0
    %280 = vmatpush1.msra.mxu0 0.0
    %281 = vmatprep.subr.mxu0 0.0
    %282 = vmatpush1.msra.mxu0 0.0
    %283 = vmatprep.subr.mxu0 0.0
    %284 = vmatpush1.msra.mxu0 0.0
    %285 = vmatprep.subr.mxu0 0.0
    %286 = vmatpush1.msra.mxu0 0.0
    %287 = vmatprep.subr.mxu0 0.0
    %288 = vmatpush1.msra.mxu0 0.0
    %289 = vmatprep.subr.mxu0 0.0
    %290 = vmatpush1.msra.mxu0 0.0
    %291 = vmatprep.subr.mxu0 0.0
    %292 = vmatpush1.msra.mxu0 0.0
    %293 = vmatprep.subr.mxu0 0.0
    %294 = vmatpush1.msra.mxu0 0.0
    %295 = vmatprep.subr.mxu0 0.0
    %296 = vmatpush1.msra.mxu0 0.0
    %297 = vmatprep.subr.mxu0 0.0
    %298 = vmatpush1.msra.mxu0 0.0
    %299 = vmatprep.subr.mxu0 0.0
    %300 = vmatpush1.msra.mxu0 0.0
    %301 = vmatprep.subr.mxu0 0.0
    %302 = vmatpush1.msra.mxu0 0.0
    %303 = vmatprep.subr.mxu0 0.0
    %304 = vmatpush1.msra.mxu0 0.0
    %305 = vmatprep.subr.mxu0 0.0
    %306 = vmatpush1.msra.mxu0 0.0
    %307 = vmatprep.subr.mxu0 0.0
    %308 = vmatpush1.msra.mxu0 0.0
    %309 = vmatprep.subr.mxu0 0.0
    %310 = vmatpush1.msra.mxu0 0.0
    %311 = vmatprep.subr.mxu0 0.0
    %312 = vmatpush1.msra.mxu0 0.0
    %313 = vmatprep.subr.mxu0 0.0
    %314 = vmatpush1.msra.mxu0 0.0
    %315 = vmatprep.subr.mxu0 0.0
    %316 = vmatpush1.msra.mxu0 0.0
    %317 = vmatprep.subr.mxu0 0.0
    %318 = vmatpush1.msra.mxu0 0.0
    %319 = vmatprep.mubr.f32.mxu0 0.0
    %320 = vmatmul.mubr.f32.gmra.mrb[0].mxu0 %v96
    %v321 = vpop.f32.mrb[0].mxu0
    %v322 = vadd.f32 0.0, %v321
    %v323 = vpop.f32.mrb[0].mxu0
    %v324 = vadd.f32 0.0, %v323
    %325 = vmatprep.mubr.f32.mxu0 0.0
    %326 = vmatmul.mubr.f32.gmra.mrb[0].mxu0 %v99
    %v327 = vpop.f32.mrb[0].mxu0
    %v328 = vadd.f32 0.0, %v327
    %v329 = vpop.f32.mrb[0].mxu0
    %v330 = vadd.f32 0.0, %v329
    %331 = vdwg.mxu0
    %332 = vmatprep.subr.mxu0 0.0
    %333 = vmatpush1.msra.mxu0 %v72
    %334 = vmatprep.subr.mxu0 0.0
    %335 = vmatpush1.msra.mxu0 %v79
    %336 = vmatprep.subr.mxu0 0.0
    %337 = vmatpush1.msra.mxu0 %v86
    %338 = vmatprep.subr.mxu0 0.0
    %339 = vmatpush1.msra.mxu0 %v93
    %340 = vmatprep.subr.mxu0 0.0
    %341 = vmatpush1.msra.mxu0 0.0
    %342 = vmatprep.subr.mxu0 0.0
    %343 = vmatpush1.msra.mxu0 0.0
    %344 = vmatprep.subr.mxu0 0.0
    %345 = vmatpush1.msra.mxu0 0.0
    %346 = vmatprep.subr.mxu0 0.0
    %347 = vmatpush1.msra.mxu0 0.0
    %348 = vmatprep.subr.mxu0 0.0
    %349 = vmatpush1.msra.mxu0 0.0
    %350 = vmatprep.subr.mxu0 0.0
    %351 = vmatpush1.msra.mxu0 0.0
    %352 = vmatprep.subr.mxu0 0.0
    %353 = vmatpush1.msra.mxu0 0.0
    %354 = vmatprep.subr.mxu0 0.0
    %355 = vmatpush1.msra.mxu0 0.0
    %356 = vmatprep.subr.mxu0 0.0
    %357 = vmatpush1.msra.mxu0 0.0
    %358 = vmatprep.subr.mxu0 0.0
    %359 = vmatpush1.msra.mxu0 0.0
    %360 = vmatprep.subr.mxu0 0.0
    %361 = vmatpush1.msra.mxu0 0.0
    %362 = vmatprep.subr.mxu0 0.0
    %363 = vmatpush1.msra.mxu0 0.0
    %364 = vmatprep.subr.mxu0 0.0
    %365 = vmatpush1.msra.mxu0 0.0
    %366 = vmatprep.subr.mxu0 0.0
    %367 = vmatpush1.msra.mxu0 0.0
    %368 = vmatprep.subr.mxu0 0.0
    %369 = vmatpush1.msra.mxu0 0.0
    %370 = vmatprep.subr.mxu0 0.0
    %371 = vmatpush1.msra.mxu0 0.0
    %372 = vmatprep.subr.mxu0 0.0
    %373 = vmatpush1.msra.mxu0 0.0
    %374 = vmatprep.subr.mxu0 0.0
    %375 = vmatpush1.msra.mxu0 0.0
    %376 = vmatprep.subr.mxu0 0.0
    %377 = vmatpush1.msra.mxu0 0.0
    %378 = vmatprep.subr.mxu0 0.0
    %379 = vmatpush1.msra.mxu0 0.0
    %380 = vmatprep.subr.mxu0 0.0
    %381 = vmatpush1.msra.mxu0 0.0
    %382 = vmatprep.subr.mxu0 0.0
    %383 = vmatpush1.msra.mxu0 0.0
    %384 = vmatprep.subr.mxu0 0.0
    %385 = vmatpush1.msra.mxu0 0.0
    %386 = vmatprep.subr.mxu0 0.0
    %387 = vmatpush1.msra.mxu0 0.0
    %388 = vmatprep.subr.mxu0 0.0
    %389 = vmatpush1.msra.mxu0 0.0
    %390 = vmatprep.subr.mxu0 0.0
    %391 = vmatpush1.msra.mxu0 0.0
    %392 = vmatprep.subr.mxu0 0.0
    %393 = vmatpush1.msra.mxu0 0.0
    %394 = vmatprep.subr.mxu0 0.0
    %395 = vmatpush1.msra.mxu0 0.0
    %396 = vmatprep.mubr.f32.mxu0 0.0
    %397 = vmatmul.mubr.f32.gmra.mrb[0].mxu0 %v96
    %v398 = vpop.f32.mrb[0].mxu0
    %v399 = vadd.f32 0.0, %v398
    %v400 = vpop.f32.mrb[0].mxu0
    %401 = vmatprep.mubr.f32.mxu0 0.0
    %402 = vmatmul.mubr.f32.gmra.mrb[0].mxu0 %v99
    %v403 = vpop.f32.mrb[0].mxu0
    %v404 = vadd.f32 0.0, %v403
    %v405 = vpop.f32.mrb[0].mxu0
    %406 = vdwg.mxu0
    %vm407 = vcmask 916480
    %v409 = vsel %vm407, %v64, 0
    %v412 = vsel %vm407, %v65, 0
    %414 = vmatprep.subr.mxu0 0.0
    %415 = vmatpush1.msra.mxu0 %v168
    %416 = vmatprep.subr.mxu0 0.0
    %417 = vmatpush1.msra.mxu0 %v174
    %418 = vmatprep.subr.mxu0 0.0
    %419 = vmatpush1.msra.mxu0 %v170
    %420 = vmatprep.subr.mxu0 0.0
    %421 = vmatpush1.msra.mxu0 %v176
    %422 = vmatprep.subr.mxu0 0.0
    %423 = vmatpush1.msra.mxu0 %v245
    %424 = vmatprep.subr.mxu0 0.0
    %425 = vmatpush1.msra.mxu0 %v251
    %426 = vmatprep.subr.mxu0 0.0
    %427 = vmatpush1.msra.mxu0 %v247
    %428 = vmatprep.subr.mxu0 0.0
    %429 = vmatpush1.msra.mxu0 %v253
    %430 = vmatprep.subr.mxu0 0.0
    %431 = vmatpush1.msra.mxu0 %v322
    %432 = vmatprep.subr.mxu0 0.0
    %433 = vmatpush1.msra.mxu0 %v328
    %434 = vmatprep.subr.mxu0 0.0
    %435 = vmatpush1.msra.mxu0 %v324
    %436 = vmatprep.subr.mxu0 0.0
    %437 = vmatpush1.msra.mxu0 %v330
    %438 = vmatprep.subr.mxu0 0.0
    %439 = vmatpush1.msra.mxu0 %v399
    %440 = vmatprep.subr.mxu0 0.0
    %441 = vmatpush1.msra.mxu0 %v404
    %442 = vmatprep.subr.mxu0 0.0
    %443 = vmatpush1.msra.mxu0 0.0
    %444 = vmatprep.subr.mxu0 0.0
    %445 = vmatpush1.msra.mxu0 0.0
    %446 = vmatprep.subr.mxu0 0.0
    %447 = vmatpush1.msra.mxu0 0.0
    %448 = vmatprep.subr.mxu0 0.0
    %449 = vmatpush1.msra.mxu0 0.0
    %450 = vmatprep.subr.mxu0 0.0
    %451 = vmatpush1.msra.mxu0 0.0
    %452 = vmatprep.subr.mxu0 0.0
    %453 = vmatpush1.msra.mxu0 0.0
    %454 = vmatprep.subr.mxu0 0.0
    %455 = vmatpush1.msra.mxu0 0.0
    %456 = vmatprep.subr.mxu0 0.0
    %457 = vmatpush1.msra.mxu0 0.0
    %458 = vmatprep.subr.mxu0 0.0
    %459 = vmatpush1.msra.mxu0 0.0
    %460 = vmatprep.subr.mxu0 0.0
    %461 = vmatpush1.msra.mxu0 0.0
    %462 = vmatprep.subr.mxu0 0.0
    %463 = vmatpush1.msra.mxu0 0.0
    %464 = vmatprep.subr.mxu0 0.0
    %465 = vmatpush1.msra.mxu0 0.0
    %466 = vmatprep.subr.mxu0 0.0
    %467 = vmatpush1.msra.mxu0 0.0
    %468 = vmatprep.subr.mxu0 0.0
    %469 = vmatpush1.msra.mxu0 0.0
    %470 = vmatprep.subr.mxu0 0.0
    %471 = vmatpush1.msra.mxu0 0.0
    %472 = vmatprep.subr.mxu0 0.0
    %473 = vmatpush1.msra.mxu0 0.0
    %474 = vmatprep.subr.mxu0 0.0
    %475 = vmatpush1.msra.mxu0 0.0
    %476 = vmatprep.subr.mxu0 0.0
    %477 = vmatpush1.msra.mxu0 0.0
    %478 = vmatprep.mubr.f32.mxu0 0.0
    %479 = vmatmul.mubr.f32.gmra.mrb[0].mxu0 %v409
    %v480 = vpop.f32.mrb[0].mxu0
    %v481 = vadd.f32 0.0, %v480
    %v482 = vpop.f32.mrb[0].mxu0
    %483 = vmatprep.mubr.f32.mxu0 0.0
    %484 = vmatmul.mubr.f32.gmra.mrb[0].mxu0 %v412
    %v485 = vpop.f32.mrb[0].mxu0
    %v486 = vadd.f32 0.0, %v485
    %v487 = vpop.f32.mrb[0].mxu0
    %488 = vdwg.mxu0
    %v489 = vld [vmem:[%s4] sm:$0xf]
    %v490 = vmul.f32 %v481, %v481
    %v491 = vmul.f32 %v486, %v486
    %v492 = vsel %vm94, %v481, 0.0
    %493 = vadd.xlane.f32.xlu0 %v492
    %v494 = vpop.xlane.xlu0 %493
    %v495 = vsel %vm94, %v486, 0.0
    %496 = vadd.xlane.f32.xlu0 %v495
    %v497 = vpop.xlane.xlu0 %496
    %v498 = vsel %vm94, %v490, 0.0
    %499 = vadd.xlane.f32.xlu0 %v498
    %v500 = vpop.xlane.xlu0 %499
    %v501 = vsel %vm94, %v491, 0.0
    %502 = vadd.xlane.f32.xlu0 %v501
    %v503 = vpop.xlane.xlu0 %502
    %v504 = vmul.f32 %v494, 0.03125
    %v505 = vmul.f32 %v497, 0.03125
    %v506 = vmul.f32 %v500, 0.03125
    %v507 = vmul.f32 %v503, 0.03125
    %v508 = vmul.f32 %v504, %v504
    %v509 = vmul.f32 %v505, %v505
    %v510 = vsub.f32 %v506, %v508
    %v511 = vsub.f32 %v507, %v509
    %v512 = vmax.f32 %v510, 0.0
    %v513 = vmax.f32 %v511, 0.0
    %v514 = vsub.f32 %v481, %v504
    %v515 = vsub.f32 %v486, %v505
    %v516 = vadd.f32 %v512, 1e-05
    %v517 = vadd.f32 %v513, 1e-05
    %v518 = vrsqrt.pop %v516
    %v519 = vrsqrt.pop %v517
    %v520 = vmul.f32 %v514, %v518
    %v521 = vmul.f32 %v515, %v519
    %v522 = vlaneseq
    %v523 = vshrl.u32 %v522, 7
    %v524 = vsub.s32 0, %v523
    %v525 = vrot.slane %v489, %v524
    %v526 = vmul.f32 %v520, %v525
    %v527 = vmul.f32 %v521, %v525
    %v528 = vlaneseq
    %v529 = vshrl.u32 %v528, 7
    %v530 = vsub.s32 1, %v529
    %v531 = vrot.slane %v489, %v530
    %v532 = vadd.f32 %v526, %v531
    %v533 = vadd.f32 %v527, %v531
    %v534 = vmax.f32 %v532, 0.0
    %v535 = vmax.f32 %v533, 0.0
    %v536 = vld [vmem:[#allocation7] sm:$0xff]
    %v537 = vld [vmem:[#allocation7 + $0x8] sm:$0xff]
    %v538 = vld [vmem:[#allocation7 + $0x10] sm:$0xff]
    %v539 = vld [vmem:[#allocation7 + $0x18] sm:$0xff]
    %v541 = vsel %vm94, %v534, 0
    %v544 = vsel %vm94, %v535, 0
    %546 = vmatprep.subr.mxu0 0.0
    %547 = vmatpush1.msra.mxu0 %v536
    %548 = vmatprep.subr.mxu0 0.0
    %549 = vmatpush1.msra.mxu0 %v537
    %550 = vmatprep.subr.mxu0 0.0
    %551 = vmatpush1.msra.mxu0 %v538
    %552 = vmatprep.subr.mxu0 0.0
    %553 = vmatpush1.msra.mxu0 %v539
    %554 = vmatprep.subr.mxu0 0.0
    %555 = vmatpush1.msra.mxu0 0.0
    %556 = vmatprep.subr.mxu0 0.0
    %557 = vmatpush1.msra.mxu0 0.0
    %558 = vmatprep.subr.mxu0 0.0
    %559 = vmatpush1.msra.mxu0 0.0
    %560 = vmatprep.subr.mxu0 0.0
    %561 = vmatpush1.msra.mxu0 0.0
    %562 = vmatprep.subr.mxu0 0.0
    %563 = vmatpush1.msra.mxu0 0.0
    %564 = vmatprep.subr.mxu0 0.0
    %565 = vmatpush1.msra.mxu0 0.0
    %566 = vmatprep.subr.mxu0 0.0
    %567 = vmatpush1.msra.mxu0 0.0
    %568 = vmatprep.subr.mxu0 0.0
    %569 = vmatpush1.msra.mxu0 0.0
    %570 = vmatprep.subr.mxu0 0.0
    %571 = vmatpush1.msra.mxu0 0.0
    %572 = vmatprep.subr.mxu0 0.0
    %573 = vmatpush1.msra.mxu0 0.0
    %574 = vmatprep.subr.mxu0 0.0
    %575 = vmatpush1.msra.mxu0 0.0
    %576 = vmatprep.subr.mxu0 0.0
    %577 = vmatpush1.msra.mxu0 0.0
    %578 = vmatprep.subr.mxu0 0.0
    %579 = vmatpush1.msra.mxu0 0.0
    %580 = vmatprep.subr.mxu0 0.0
    %581 = vmatpush1.msra.mxu0 0.0
    %582 = vmatprep.subr.mxu0 0.0
    %583 = vmatpush1.msra.mxu0 0.0
    %584 = vmatprep.subr.mxu0 0.0
    %585 = vmatpush1.msra.mxu0 0.0
    %586 = vmatprep.subr.mxu0 0.0
    %587 = vmatpush1.msra.mxu0 0.0
    %588 = vmatprep.subr.mxu0 0.0
    %589 = vmatpush1.msra.mxu0 0.0
    %590 = vmatprep.subr.mxu0 0.0
    %591 = vmatpush1.msra.mxu0 0.0
    %592 = vmatprep.subr.mxu0 0.0
    %593 = vmatpush1.msra.mxu0 0.0
    %594 = vmatprep.subr.mxu0 0.0
    %595 = vmatpush1.msra.mxu0 0.0
    %596 = vmatprep.subr.mxu0 0.0
    %597 = vmatpush1.msra.mxu0 0.0
    %598 = vmatprep.subr.mxu0 0.0
    %599 = vmatpush1.msra.mxu0 0.0
    %600 = vmatprep.subr.mxu0 0.0
    %601 = vmatpush1.msra.mxu0 0.0
    %602 = vmatprep.subr.mxu0 0.0
    %603 = vmatpush1.msra.mxu0 0.0
    %604 = vmatprep.subr.mxu0 0.0
    %605 = vmatpush1.msra.mxu0 0.0
    %606 = vmatprep.subr.mxu0 0.0
    %607 = vmatpush1.msra.mxu0 0.0
    %608 = vmatprep.subr.mxu0 0.0
    %609 = vmatpush1.msra.mxu0 0.0
    %610 = vmatprep.mubr.f32.mxu0 0.0
    %611 = vmatmul.mubr.f32.gmra.mrb[0].mxu0 %v541
    %v612 = vpop.f32.mrb[0].mxu0
    %v613 = vadd.f32 0.0, %v612
    %v614 = vpop.f32.mrb[0].mxu0
    %615 = vmatprep.mubr.f32.mxu0 0.0
    %616 = vmatmul.mubr.f32.gmra.mrb[0].mxu0 %v544
    %v617 = vpop.f32.mrb[0].mxu0
    %v618 = vadd.f32 0.0, %v617
    %v619 = vpop.f32.mrb[0].mxu0
    %620 = vdwg.mxu0
    %v621 = vmul.f32 %v613, %v613
    %v622 = vmul.f32 %v618, %v618
    %v623 = vsel %vm94, %v613, 0.0
    %624 = vadd.xlane.f32.xlu0 %v623
    %v625 = vpop.xlane.xlu0 %624
    %v626 = vsel %vm94, %v618, 0.0
    %627 = vadd.xlane.f32.xlu0 %v626
    %v628 = vpop.xlane.xlu0 %627
    %v629 = vsel %vm94, %v621, 0.0
    %630 = vadd.xlane.f32.xlu0 %v629
    %v631 = vpop.xlane.xlu0 %630
    %v632 = vsel %vm94, %v622, 0.0
    %633 = vadd.xlane.f32.xlu0 %v632
    %v634 = vpop.xlane.xlu0 %633
    %v635 = vmul.f32 %v625, 0.03125
    %v636 = vmul.f32 %v628, 0.03125
    %v637 = vmul.f32 %v631, 0.03125
    %v638 = vmul.f32 %v634, 0.03125
    %v639 = vmul.f32 %v635, %v635
    %v640 = vmul.f32 %v636, %v636
    %v641 = vsub.f32 %v637, %v639
    %v642 = vsub.f32 %v638, %v640
    %v643 = vmax.f32 %v641, 0.0
    %v644 = vmax.f32 %v642, 0.0
    %v645 = vsub.f32 %v613, %v635
    %v646 = vsub.f32 %v618, %v636
    %v647 = vadd.f32 %v643, 1e-05
    %v648 = vadd.f32 %v644, 1e-05
    %v649 = vrsqrt.pop %v647
    %v650 = vrsqrt.pop %v648
    %v651 = vmul.f32 %v645, %v649
    %v652 = vmul.f32 %v646, %v650
    %v653 = vlaneseq
    %v654 = vshrl.u32 %v653, 7
    %v655 = vsub.s32 2, %v654
    %v656 = vrot.slane %v489, %v655
    %v657 = vmul.f32 %v651, %v656
    %v658 = vmul.f32 %v652, %v656
    %v659 = vlaneseq
    %v660 = vshrl.u32 %v659, 7
    %v661 = vsub.s32 3, %v660
    %v662 = vrot.slane %v489, %v661
    %v663 = vadd.f32 %v657, %v662
    %v664 = vadd.f32 %v658, %v662
    %v665 = vadd.f32 %v663, %v62
    %v666 = vadd.f32 %v664, %v63
    %v667 = vmax.f32 %v665, 0.0
    %v668 = vmax.f32 %v666, 0.0
    %s669 = scalar_lea.vmem [#allocation5], 224
    %v670 = vld [vmem:[%s669] sm:$0xff]
    %v671 = vld [vmem:[%s669 + $0x8] sm:$0xff]
    %v672 = vld [vmem:[%s669 + $0x10] sm:$0xff]
    %v673 = vld [vmem:[%s669 + $0x18] sm:$0xff]
    %v674 = vld [vmem:[%s669 + $0x20] sm:$0xff]
    %v675 = vld [vmem:[%s669 + $0x28] sm:$0xff]
    %v676 = vld [vmem:[%s669 + $0x30] sm:$0xff]
    %v677 = vld [vmem:[%s669 + $0x38] sm:$0xff]
    %v678 = vld [vmem:[%s669 + $0x40] sm:$0xff]
    %v679 = vld [vmem:[%s669 + $0x48] sm:$0xff]
    %v680 = vld [vmem:[%s669 + $0x50] sm:$0xff]
    %v681 = vld [vmem:[%s669 + $0x58] sm:$0xff]
    %v682 = vld [vmem:[%s669 + $0x60] sm:$0xff]
    %v683 = vld [vmem:[%s669 + $0x68] sm:$0xff]
    %v684 = vld [vmem:[%s669 + $0x70] sm:$0xff]
    %v685 = vld [vmem:[%s669 + $0x78] sm:$0xff]
    %v686 = vld [vmem:[%s669 + $0x80] sm:$0xff]
    %v687 = vld [vmem:[%s669 + $0x88] sm:$0xff]
    %v688 = vld [vmem:[%s669 + $0x90] sm:$0xff]
    %v689 = vld [vmem:[%s669 + $0x98] sm:$0xff]
    %v690 = vld [vmem:[%s669 + $0xa0] sm:$0xff]
    %v691 = vld [vmem:[%s669 + $0xa8] sm:$0xff]
    %v692 = vld [vmem:[%s669 + $0xb0] sm:$0xff]
    %v693 = vld [vmem:[%s669 + $0xb8] sm:$0xff]
    %v694 = vld [vmem:[%s669 + $0xc0] sm:$0xff]
    %v695 = vld [vmem:[%s669 + $0xc8] sm:$0xff]
    %v696 = vld [vmem:[%s669 + $0xd0] sm:$0xff]
    %v697 = vld [vmem:[%s669 + $0xd8] sm:$0xff]
    %v699 = vsel %vm94, %v667, 0
    %v702 = vsel %vm94, %v668, 0
    %704 = vmatprep.subr.mxu0 %v671
    %705 = vmatpush1.msra.mxu0 %v670
    %706 = vmatprep.subr.mxu0 %v678
    %707 = vmatpush1.msra.mxu0 %v677
    %708 = vmatprep.subr.mxu0 %v685
    %709 = vmatpush1.msra.mxu0 %v684
    %710 = vmatprep.subr.mxu0 %v692
    %711 = vmatpush1.msra.mxu0 %v691
    %712 = vmatprep.subr.mxu0 0.0
    %713 = vmatpush1.msra.mxu0 0.0
    %714 = vmatprep.subr.mxu0 0.0
    %715 = vmatpush1.msra.mxu0 0.0
    %716 = vmatprep.subr.mxu0 0.0
    %717 = vmatpush1.msra.mxu0 0.0
    %718 = vmatprep.subr.mxu0 0.0
    %719 = vmatpush1.msra.mxu0 0.0
    %720 = vmatprep.subr.mxu0 0.0
    %721 = vmatpush1.msra.mxu0 0.0
    %722 = vmatprep.subr.mxu0 0.0
    %723 = vmatpush1.msra.mxu0 0.0
    %724 = vmatprep.subr.mxu0 0.0
    %725 = vmatpush1.msra.mxu0 0.0
    %726 = vmatprep.subr.mxu0 0.0
    %727 = vmatpush1.msra.mxu0 0.0
    %728 = vmatprep.subr.mxu0 0.0
    %729 = vmatpush1.msra.mxu0 0.0
    %730 = vmatprep.subr.mxu0 0.0
    %731 = vmatpush1.msra.mxu0 0.0
    %732 = vmatprep.subr.mxu0 0.0
    %733 = vmatpush1.msra.mxu0 0.0
    %734 = vmatprep.subr.mxu0 0.0
    %735 = vmatpush1.msra.mxu0 0.0
    %736 = vmatprep.subr.mxu0 0.0
    %737 = vmatpush1.msra.mxu0 0.0
    %738 = vmatprep.subr.mxu0 0.0
    %739 = vmatpush1.msra.mxu0 0.0
    %740 = vmatprep.subr.mxu0 0.0
    %741 = vmatpush1.msra.mxu0 0.0
    %742 = vmatprep.subr.mxu0 0.0
    %743 = vmatpush1.msra.mxu0 0.0
    %744 = vmatprep.subr.mxu0 0.0
    %745 = vmatpush1.msra.mxu0 0.0
    %746 = vmatprep.subr.mxu0 0.0
    %747 = vmatpush1.msra.mxu0 0.0
    %748 = vmatprep.subr.mxu0 0.0
    %749 = vmatpush1.msra.mxu0 0.0
    %750 = vmatprep.subr.mxu0 0.0
    %751 = vmatpush1.msra.mxu0 0.0
    %752 = vmatprep.subr.mxu0 0.0
    %753 = vmatpush1.msra.mxu0 0.0
    %754 = vmatprep.subr.mxu0 0.0
    %755 = vmatpush1.msra.mxu0 0.0
    %756 = vmatprep.subr.mxu0 0.0
    %757 = vmatpush1.msra.mxu0 0.0
    %758 = vmatprep.subr.mxu0 0.0
    %759 = vmatpush1.msra.mxu0 0.0
    %760 = vmatprep.subr.mxu0 0.0
    %761 = vmatpush1.msra.mxu0 0.0
    %762 = vmatprep.subr.mxu0 0.0
    %763 = vmatpush1.msra.mxu0 0.0
    %764 = vmatprep.subr.mxu0 0.0
    %765 = vmatpush1.msra.mxu0 0.0
    %766 = vmatprep.subr.mxu0 0.0
    %767 = vmatpush1.msra.mxu0 0.0
    %768 = vmatprep.mubr.f32.mxu0 0.0
    %769 = vmatmul.mubr.f32.gmra.mrb[0].mxu0 %v699
    %v770 = vpop.f32.mrb[0].mxu0
    %v771 = vadd.f32 0.0, %v770
    %v772 = vpop.f32.mrb[0].mxu0
    %v773 = vadd.f32 0.0, %v772
    %774 = vmatprep.mubr.f32.mxu0 0.0
    %775 = vmatmul.mubr.f32.gmra.mrb[0].mxu0 %v702
    %v776 = vpop.f32.mrb[0].mxu0
    %v777 = vadd.f32 0.0, %v776
    %v778 = vpop.f32.mrb[0].mxu0
    %v779 = vadd.f32 0.0, %v778
    %780 = vdwg.mxu0
    %781 = vmatprep.subr.mxu0 %v673
    %782 = vmatpush1.msra.mxu0 %v672
    %783 = vmatprep.subr.mxu0 %v680
    %784 = vmatpush1.msra.mxu0 %v679
    %785 = vmatprep.subr.mxu0 %v687
    %786 = vmatpush1.msra.mxu0 %v686
    %787 = vmatprep.subr.mxu0 %v694
    %788 = vmatpush1.msra.mxu0 %v693
    %789 = vmatprep.subr.mxu0 0.0
    %790 = vmatpush1.msra.mxu0 0.0
    %791 = vmatprep.subr.mxu0 0.0
    %792 = vmatpush1.msra.mxu0 0.0
    %793 = vmatprep.subr.mxu0 0.0
    %794 = vmatpush1.msra.mxu0 0.0
    %795 = vmatprep.subr.mxu0 0.0
    %796 = vmatpush1.msra.mxu0 0.0
    %797 = vmatprep.subr.mxu0 0.0
    %798 = vmatpush1.msra.mxu0 0.0
    %799 = vmatprep.subr.mxu0 0.0
    %800 = vmatpush1.msra.mxu0 0.0
    %801 = vmatprep.subr.mxu0 0.0
    %802 = vmatpush1.msra.mxu0 0.0
    %803 = vmatprep.subr.mxu0 0.0
    %804 = vmatpush1.msra.mxu0 0.0
    %805 = vmatprep.subr.mxu0 0.0
    %806 = vmatpush1.msra.mxu0 0.0
    %807 = vmatprep.subr.mxu0 0.0
    %808 = vmatpush1.msra.mxu0 0.0
    %809 = vmatprep.subr.mxu0 0.0
    %810 = vmatpush1.msra.mxu0 0.0
    %811 = vmatprep.subr.mxu0 0.0
    %812 = vmatpush1.msra.mxu0 0.0
    %813 = vmatprep.subr.mxu0 0.0
    %814 = vmatpush1.msra.mxu0 0.0
    %815 = vmatprep.subr.mxu0 0.0
    %816 = vmatpush1.msra.mxu0 0.0
    %817 = vmatprep.subr.mxu0 0.0
    %818 = vmatpush1.msra.mxu0 0.0
    %819 = vmatprep.subr.mxu0 0.0
    %820 = vmatpush1.msra.mxu0 0.0
    %821 = vmatprep.subr.mxu0 0.0
    %822 = vmatpush1.msra.mxu0 0.0
    %823 = vmatprep.subr.mxu0 0.0
    %824 = vmatpush1.msra.mxu0 0.0
    %825 = vmatprep.subr.mxu0 0.0
    %826 = vmatpush1.msra.mxu0 0.0
    %827 = vmatprep.subr.mxu0 0.0
    %828 = vmatpush1.msra.mxu0 0.0
    %829 = vmatprep.subr.mxu0 0.0
    %830 = vmatpush1.msra.mxu0 0.0
    %831 = vmatprep.subr.mxu0 0.0
    %832 = vmatpush1.msra.mxu0 0.0
    %833 = vmatprep.subr.mxu0 0.0
    %834 = vmatpush1.msra.mxu0 0.0
    %835 = vmatprep.subr.mxu0 0.0
    %836 = vmatpush1.msra.mxu0 0.0
    %837 = vmatprep.subr.mxu0 0.0
    %838 = vmatpush1.msra.mxu0 0.0
    %839 = vmatprep.subr.mxu0 0.0
    %840 = vmatpush1.msra.mxu0 0.0
    %841 = vmatprep.subr.mxu0 0.0
    %842 = vmatpush1.msra.mxu0 0.0
    %843 = vmatprep.subr.mxu0 0.0
    %844 = vmatpush1.msra.mxu0 0.0
    %845 = vmatprep.mubr.f32.mxu0 0.0
    %846 = vmatmul.mubr.f32.gmra.mrb[0].mxu0 %v699
    %v847 = vpop.f32.mrb[0].mxu0
    %v848 = vadd.f32 0.0, %v847
    %v849 = vpop.f32.mrb[0].mxu0
    %v850 = vadd.f32 0.0, %v849
    %851 = vmatprep.mubr.f32.mxu0 0.0
    %852 = vmatmul.mubr.f32.gmra.mrb[0].mxu0 %v702
    %v853 = vpop.f32.mrb[0].mxu0
    %v854 = vadd.f32 0.0, %v853
    %v855 = vpop.f32.mrb[0].mxu0
    %v856 = vadd.f32 0.0, %v855
    %857 = vdwg.mxu0
    %858 = vmatprep.subr.mxu0 %v675
    %859 = vmatpush1.msra.mxu0 %v674
    %860 = vmatprep.subr.mxu0 %v682
    %861 = vmatpush1.msra.mxu0 %v681
    %862 = vmatprep.subr.mxu0 %v689
    %863 = vmatpush1.msra.mxu0 %v688
    %864 = vmatprep.subr.mxu0 %v696
    %865 = vmatpush1.msra.mxu0 %v695
    %866 = vmatprep.subr.mxu0 0.0
    %867 = vmatpush1.msra.mxu0 0.0
    %868 = vmatprep.subr.mxu0 0.0
    %869 = vmatpush1.msra.mxu0 0.0
    %870 = vmatprep.subr.mxu0 0.0
    %871 = vmatpush1.msra.mxu0 0.0
    %872 = vmatprep.subr.mxu0 0.0
    %873 = vmatpush1.msra.mxu0 0.0
    %874 = vmatprep.subr.mxu0 0.0
    %875 = vmatpush1.msra.mxu0 0.0
    %876 = vmatprep.subr.mxu0 0.0
    %877 = vmatpush1.msra.mxu0 0.0
    %878 = vmatprep.subr.mxu0 0.0
    %879 = vmatpush1.msra.mxu0 0.0
    %880 = vmatprep.subr.mxu0 0.0
    %881 = vmatpush1.msra.mxu0 0.0
    %882 = vmatprep.subr.mxu0 0.0
    %883 = vmatpush1.msra.mxu0 0.0
    %884 = vmatprep.subr.mxu0 0.0
    %885 = vmatpush1.msra.mxu0 0.0
    %886 = vmatprep.subr.mxu0 0.0
    %887 = vmatpush1.msra.mxu0 0.0
    %888 = vmatprep.subr.mxu0 0.0
    %889 = vmatpush1.msra.mxu0 0.0
    %890 = vmatprep.subr.mxu0 0.0
    %891 = vmatpush1.msra.mxu0 0.0
    %892 = vmatprep.subr.mxu0 0.0
    %893 = vmatpush1.msra.mxu0 0.0
    %894 = vmatprep.subr.mxu0 0.0
    %895 = vmatpush1.msra.mxu0 0.0
    %896 = vmatprep.subr.mxu0 0.0
    %897 = vmatpush1.msra.mxu0 0.0
    %898 = vmatprep.subr.mxu0 0.0
    %899 = vmatpush1.msra.mxu0 0.0
    %900 = vmatprep.subr.mxu0 0.0
    %901 = vmatpush1.msra.mxu0 0.0
    %902 = vmatprep.subr.mxu0 0.0
    %903 = vmatpush1.msra.mxu0 0.0
    %904 = vmatprep.subr.mxu0 0.0
    %905 = vmatpush1.msra.mxu0 0.0
    %906 = vmatprep.subr.mxu0 0.0
    %907 = vmatpush1.msra.mxu0 0.0
    %908 = vmatprep.subr.mxu0 0.0
    %909 = vmatpush1.msra.mxu0 0.0
    %910 = vmatprep.subr.mxu0 0.0
    %911 = vmatpush1.msra.mxu0 0.0
    %912 = vmatprep.subr.mxu0 0.0
    %913 = vmatpush1.msra.mxu0 0.0
    %914 = vmatprep.subr.mxu0 0.0
    %915 = vmatpush1.msra.mxu0 0.0
    %916 = vmatprep.subr.mxu0 0.0
    %917 = vmatpush1.msra.mxu0 0.0
    %918 = vmatprep.subr.mxu0 0.0
    %919 = vmatpush1.msra.mxu0 0.0
    %920 = vmatprep.subr.mxu0 0.0
    %921 = vmatpush1.msra.mxu0 0.0
    %922 = vmatprep.mubr.f32.mxu0 0.0
    %923 = vmatmul.mubr.f32.gmra.mrb[0].mxu0 %v699
    %v924 = vpop.f32.mrb[0].mxu0
    %v925 = vadd.f32 0.0, %v924
    %v926 = vpop.f32.mrb[0].mxu0
    %v927 = vadd.f32 0.0, %v926
    %928 = vmatprep.mubr.f32.mxu0 0.0
    %929 = vmatmul.mubr.f32.gmra.mrb[0].mxu0 %v702
    %v930 = vpop.f32.mrb[0].mxu0
    %v931 = vadd.f32 0.0, %v930
    %v932 = vpop.f32.mrb[0].mxu0
    %v933 = vadd.f32 0.0, %v932
    %934 = vdwg.mxu0
    %935 = vmatprep.subr.mxu0 0.0
    %936 = vmatpush1.msra.mxu0 %v676
    %937 = vmatprep.subr.mxu0 0.0
    %938 = vmatpush1.msra.mxu0 %v683
    %939 = vmatprep.subr.mxu0 0.0
    %940 = vmatpush1.msra.mxu0 %v690
    %941 = vmatprep.subr.mxu0 0.0
    %942 = vmatpush1.msra.mxu0 %v697
    %943 = vmatprep.subr.mxu0 0.0
    %944 = vmatpush1.msra.mxu0 0.0
    %945 = vmatprep.subr.mxu0 0.0
    %946 = vmatpush1.msra.mxu0 0.0
    %947 = vmatprep.subr.mxu0 0.0
    %948 = vmatpush1.msra.mxu0 0.0
    %949 = vmatprep.subr.mxu0 0.0
    %950 = vmatpush1.msra.mxu0 0.0
    %951 = vmatprep.subr.mxu0 0.0
    %952 = vmatpush1.msra.mxu0 0.0
    %953 = vmatprep.subr.mxu0 0.0
    %954 = vmatpush1.msra.mxu0 0.0
    %955 = vmatprep.subr.mxu0 0.0
    %956 = vmatpush1.msra.mxu0 0.0
    %957 = vmatprep.subr.mxu0 0.0
    %958 = vmatpush1.msra.mxu0 0.0
    %959 = vmatprep.subr.mxu0 0.0
    %960 = vmatpush1.msra.mxu0 0.0
    %961 = vmatprep.subr.mxu0 0.0
    %962 = vmatpush1.msra.mxu0 0.0
    %963 = vmatprep.subr.mxu0 0.0
    %964 = vmatpush1.msra.mxu0 0.0
    %965 = vmatprep.subr.mxu0 0.0
    %966 = vmatpush1.msra.mxu0 0.0
    %967 = vmatprep.subr.mxu0 0.0
    %968 = vmatpush1.msra.mxu0 0.0
    %969 = vmatprep.subr.mxu0 0.0
    %970 = vmatpush1.msra.mxu0 0.0
    %971 = vmatprep.subr.mxu0 0.0
    %972 = vmatpush1.msra.mxu0 0.0
    %973 = vmatprep.subr.mxu0 0.0
    %974 = vmatpush1.msra.mxu0 0.0
    %975 = vmatprep.subr.mxu0 0.0
    %976 = vmatpush1.msra.mxu0 0.0
    %977 = vmatprep.subr.mxu0 0.0
    %978 = vmatpush1.msra.mxu0 0.0
    %979 = vmatprep.subr.mxu0 0.0
    %980 = vmatpush1.msra.mxu0 0.0
    %981 = vmatprep.subr.mxu0 0.0
    %982 = vmatpush1.msra.mxu0 0.0
    %983 = vmatprep.subr.mxu0 0.0
    %984 = vmatpush1.msra.mxu0 0.0
    %985 = vmatprep.subr.mxu0 0.0
    %986 = vmatpush1.msra.mxu0 0.0
    %987 = vmatprep.subr.mxu0 0.0
    %988 = vmatpush1.msra.mxu0 0.0
    %989 = vmatprep.subr.mxu0 0.0
    %990 = vmatpush1.msra.mxu0 0.0
    %991 = vmatprep.subr.mxu0 0.0
    %992 = vmatpush1.msra.mxu0 0.0
    %993 = vmatprep.subr.mxu0 0.0
    %994 = vmatpush1.msra.mxu0 0.0
    %995 = vmatprep.subr.mxu0 0.0
    %996 = vmatpush1.msra.mxu0 0.0
    %997 = vmatprep.subr.mxu0 0.0
    %998 = vmatpush1.msra.mxu0 0.0
    %999 = vmatprep.mubr.f32.mxu0 0.0
    %1000 = vmatmul.mubr.f32.gmra.mrb[0].mxu0 %v699
    %v1001 = vpop.f32.mrb[0].mxu0
    %v1002 = vadd.f32 0.0, %v1001
    %v1003 = vpop.f32.mrb[0].mxu0
    %1004 = vmatprep.mubr.f32.mxu0 0.0
    %1005 = vmatmul.mubr.f32.gmra.mrb[0].mxu0 %v702
    %v1006 = vpop.f32.mrb[0].mxu0
    %v1007 = vadd.f32 0.0, %v1006
    %v1008 = vpop.f32.mrb[0].mxu0
    %1009 = vdwg.mxu0
    %1010 = vmatprep.subr.mxu0 0.0
    %1011 = vmatpush1.msra.mxu0 %v771
    %1012 = vmatprep.subr.mxu0 0.0
    %1013 = vmatpush1.msra.mxu0 %v777
    %1014 = vmatprep.subr.mxu0 0.0
    %1015 = vmatpush1.msra.mxu0 %v773
    %1016 = vmatprep.subr.mxu0 0.0
    %1017 = vmatpush1.msra.mxu0 %v779
    %1018 = vmatprep.subr.mxu0 0.0
    %1019 = vmatpush1.msra.mxu0 %v848
    %1020 = vmatprep.subr.mxu0 0.0
    %1021 = vmatpush1.msra.mxu0 %v854
    %1022 = vmatprep.subr.mxu0 0.0
    %1023 = vmatpush1.msra.mxu0 %v850
    %1024 = vmatprep.subr.mxu0 0.0
    %1025 = vmatpush1.msra.mxu0 %v856
    %1026 = vmatprep.subr.mxu0 0.0
    %1027 = vmatpush1.msra.mxu0 %v925
    %1028 = vmatprep.subr.mxu0 0.0
    %1029 = vmatpush1.msra.mxu0 %v931
    %1030 = vmatprep.subr.mxu0 0.0
    %1031 = vmatpush1.msra.mxu0 %v927
    %1032 = vmatprep.subr.mxu0 0.0
    %1033 = vmatpush1.msra.mxu0 %v933
    %1034 = vmatprep.subr.mxu0 0.0
    %1035 = vmatpush1.msra.mxu0 %v1002
    %1036 = vmatprep.subr.mxu0 0.0
    %1037 = vmatpush1.msra.mxu0 %v1007
    %1038 = vmatprep.subr.mxu0 0.0
    %1039 = vmatpush1.msra.mxu0 0.0
    %1040 = vmatprep.subr.mxu0 0.0
    %1041 = vmatpush1.msra.mxu0 0.0
    %1042 = vmatprep.subr.mxu0 0.0
    %1043 = vmatpush1.msra.mxu0 0.0
    %1044 = vmatprep.subr.mxu0 0.0
    %1045 = vmatpush1.msra.mxu0 0.0
    %1046 = vmatprep.subr.mxu0 0.0
    %1047 = vmatpush1.msra.mxu0 0.0
    %1048 = vmatprep.subr.mxu0 0.0
    %1049 = vmatpush1.msra.mxu0 0.0
    %1050 = vmatprep.subr.mxu0 0.0
    %1051 = vmatpush1.msra.mxu0 0.0
    %1052 = vmatprep.subr.mxu0 0.0
    %1053 = vmatpush1.msra.mxu0 0.0
    %1054 = vmatprep.subr.mxu0 0.0
    %1055 = vmatpush1.msra.mxu0 0.0
    %1056 = vmatprep.subr.mxu0 0.0
    %1057 = vmatpush1.msra.mxu0 0.0
    %1058 = vmatprep.subr.mxu0 0.0
    %1059 = vmatpush1.msra.mxu0 0.0
    %1060 = vmatprep.subr.mxu0 0.0
    %1061 = vmatpush1.msra.mxu0 0.0
    %1062 = vmatprep.subr.mxu0 0.0
    %1063 = vmatpush1.msra.mxu0 0.0
    %1064 = vmatprep.subr.mxu0 0.0
    %1065 = vmatpush1.msra.mxu0 0.0
    %1066 = vmatprep.subr.mxu0 0.0
    %1067 = vmatpush1.msra.mxu0 0.0
    %1068 = vmatprep.subr.mxu0 0.0
    %1069 = vmatpush1.msra.mxu0 0.0
    %1070 = vmatprep.subr.mxu0 0.0
    %1071 = vmatpush1.msra.mxu0 0.0
    %1072 = vmatprep.subr.mxu0 0.0
    %1073 = vmatpush1.msra.mxu0 0.0
    %1074 = vmatprep.mubr.f32.mxu0 0.0
    %1075 = vmatmul.mubr.f32.gmra.mrb[0].mxu0 %v409
    %v1076 = vpop.f32.mrb[0].mxu0
    %v1077 = vadd.f32 0.0, %v1076
    %v1078 = vpop.f32.mrb[0].mxu0
    %1079 = vmatprep.mubr.f32.mxu0 0.0
    %1080 = vmatmul.mubr.f32.gmra.mrb[0].mxu0 %v412
    %v1081 = vpop.f32.mrb[0].mxu0
    %v1082 = vadd.f32 0.0, %v1081
    %v1083 = vpop.f32.mrb[0].mxu0
    %1084 = vdwg.mxu0
    %s1085 = scalar_lea.vmem %s4, 4
    %v1086 = vld [vmem:[%s1085] sm:$0xf]
    %v1087 = vmul.f32 %v1077, %v1077
    %v1088 = vmul.f32 %v1082, %v1082
    %v1089 = vsel %vm94, %v1077, 0.0
    %1090 = vadd.xlane.f32.xlu0 %v1089
    %v1091 = vpop.xlane.xlu0 %1090
    %v1092 = vsel %vm94, %v1082, 0.0
    %1093 = vadd.xlane.f32.xlu0 %v1092
    %v1094 = vpop.xlane.xlu0 %1093
    %v1095 = vsel %vm94, %v1087, 0.0
    %1096 = vadd.xlane.f32.xlu0 %v1095
    %v1097 = vpop.xlane.xlu0 %1096
    %v1098 = vsel %vm94, %v1088, 0.0
    %1099 = vadd.xlane.f32.xlu0 %v1098
    %v1100 = vpop.xlane.xlu0 %1099
    %v1101 = vmul.f32 %v1091, 0.03125
    %v1102 = vmul.f32 %v1094, 0.03125
    %v1103 = vmul.f32 %v1097, 0.03125
    %v1104 = vmul.f32 %v1100, 0.03125
    %v1105 = vmul.f32 %v1101, %v1101
    %v1106 = vmul.f32 %v1102, %v1102
    %v1107 = vsub.f32 %v1103, %v1105
    %v1108 = vsub.f32 %v1104, %v1106
    %v1109 = vmax.f32 %v1107, 0.0
    %v1110 = vmax.f32 %v1108, 0.0
    %v1111 = vsub.f32 %v1077, %v1101
    %v1112 = vsub.f32 %v1082, %v1102
    %v1113 = vadd.f32 %v1109, 1e-05
    %v1114 = vadd.f32 %v1110, 1e-05
    %v1115 = vrsqrt.pop %v1113
    %v1116 = vrsqrt.pop %v1114
    %v1117 = vmul.f32 %v1111, %v1115
    %v1118 = vmul.f32 %v1112, %v1116
    %v1119 = vlaneseq
    %v1120 = vshrl.u32 %v1119, 7
    %v1121 = vsub.s32 0, %v1120
    %v1122 = vrot.slane %v1086, %v1121
    %v1123 = vmul.f32 %v1117, %v1122
    %v1124 = vmul.f32 %v1118, %v1122
    %v1125 = vlaneseq
    %v1126 = vshrl.u32 %v1125, 7
    %v1127 = vsub.s32 1, %v1126
    %v1128 = vrot.slane %v1086, %v1127
    %v1129 = vadd.f32 %v1123, %v1128
    %v1130 = vadd.f32 %v1124, %v1128
    %v1131 = vmax.f32 %v1129, 0.0
    %v1132 = vmax.f32 %v1130, 0.0
    %s1133 = scalar_lea.vmem [#allocation7], 32
    %v1134 = vld [vmem:[%s1133] sm:$0xff]
    %v1135 = vld [vmem:[%s1133 + $0x8] sm:$0xff]
    %v1136 = vld [vmem:[%s1133 + $0x10] sm:$0xff]
    %v1137 = vld [vmem:[%s1133 + $0x18] sm:$0xff]
    %v1139 = vsel %vm94, %v1131, 0
    %v1142 = vsel %vm94, %v1132, 0
    %1144 = vmatprep.subr.mxu0 0.0
    %1145 = vmatpush1.msra.mxu0 %v1134
    %1146 = vmatprep.subr.mxu0 0.0
    %1147 = vmatpush1.msra.mxu0 %v1135
    %1148 = vmatprep.subr.mxu0 0.0
    %1149 = vmatpush1.msra.mxu0 %v1136
    %1150 = vmatprep.subr.mxu0 0.0
    %1151 = vmatpush1.msra.mxu0 %v1137
    %1152 = vmatprep.subr.mxu0 0.0
    %1153 = vmatpush1.msra.mxu0 0.0
    %1154 = vmatprep.subr.mxu0 0.0
    %1155 = vmatpush1.msra.mxu0 0.0
    %1156 = vmatprep.subr.mxu0 0.0
    %1157 = vmatpush1.msra.mxu0 0.0
    %1158 = vmatprep.subr.mxu0 0.0
    %1159 = vmatpush1.msra.mxu0 0.0
    %1160 = vmatprep.subr.mxu0 0.0
    %1161 = vmatpush1.msra.mxu0 0.0
    %1162 = vmatprep.subr.mxu0 0.0
    %1163 = vmatpush1.msra.mxu0 0.0
    %1164 = vmatprep.subr.mxu0 0.0
    %1165 = vmatpush1.msra.mxu0 0.0
    %1166 = vmatprep.subr.mxu0 0.0
    %1167 = vmatpush1.msra.mxu0 0.0
    %1168 = vmatprep.subr.mxu0 0.0
    %1169 = vmatpush1.msra.mxu0 0.0
    %1170 = vmatprep.subr.mxu0 0.0
    %1171 = vmatpush1.msra.mxu0 0.0
    %1172 = vmatprep.subr.mxu0 0.0
    %1173 = vmatpush1.msra.mxu0 0.0
    %1174 = vmatprep.subr.mxu0 0.0
    %1175 = vmatpush1.msra.mxu0 0.0
    %1176 = vmatprep.subr.mxu0 0.0
    %1177 = vmatpush1.msra.mxu0 0.0
    %1178 = vmatprep.subr.mxu0 0.0
    %1179 = vmatpush1.msra.mxu0 0.0
    %1180 = vmatprep.subr.mxu0 0.0
    %1181 = vmatpush1.msra.mxu0 0.0
    %1182 = vmatprep.subr.mxu0 0.0
    %1183 = vmatpush1.msra.mxu0 0.0
    %1184 = vmatprep.subr.mxu0 0.0
    %1185 = vmatpush1.msra.mxu0 0.0
    %1186 = vmatprep.subr.mxu0 0.0
    %1187 = vmatpush1.msra.mxu0 0.0
    %1188 = vmatprep.subr.mxu0 0.0
    %1189 = vmatpush1.msra.mxu0 0.0
    %1190 = vmatprep.subr.mxu0 0.0
    %1191 = vmatpush1.msra.mxu0 0.0
    %1192 = vmatprep.subr.mxu0 0.0
    %1193 = vmatpush1.msra.mxu0 0.0
    %1194 = vmatprep.subr.mxu0 0.0
    %1195 = vmatpush1.msra.mxu0 0.0
    %1196 = vmatprep.subr.mxu0 0.0
    %1197 = vmatpush1.msra.mxu0 0.0
    %1198 = vmatprep.subr.mxu0 0.0
    %1199 = vmatpush1.msra.mxu0 0.0
    %1200 = vmatprep.subr.mxu0 0.0
    %1201 = vmatpush1.msra.mxu0 0.0
    %1202 = vmatprep.subr.mxu0 0.0
    %1203 = vmatpush1.msra.mxu0 0.0
    %1204 = vmatprep.subr.mxu0 0.0
    %1205 = vmatpush1.msra.mxu0 0.0
    %1206 = vmatprep.subr.mxu0 0.0
    %1207 = vmatpush1.msra.mxu0 0.0
    %1208 = vmatprep.mubr.f32.mxu0 0.0
    %1209 = vmatmul.mubr.f32.gmra.mrb[0].mxu0 %v1139
    %v1210 = vpop.f32.mrb[0].mxu0
    %v1211 = vadd.f32 0.0, %v1210
    %v1212 = vpop.f32.mrb[0].mxu0
    %1213 = vmatprep.mubr.f32.mxu0 0.0
    %1214 = vmatmul.mubr.f32.gmra.mrb[0].mxu0 %v1142
    %v1215 = vpop.f32.mrb[0].mxu0
    %v1216 = vadd.f32 0.0, %v1215
    %v1217 = vpop.f32.mrb[0].mxu0
    %1218 = vdwg.mxu0
    %v1219 = vmul.f32 %v1211, %v1211
    %v1220 = vmul.f32 %v1216, %v1216
    %v1221 = vsel %vm94, %v1211, 0.0
    %1222 = vadd.xlane.f32.xlu0 %v1221
    %v1223 = vpop.xlane.xlu0 %1222
    %v1224 = vsel %vm94, %v1216, 0.0
    %1225 = vadd.xlane.f32.xlu0 %v1224
    %v1226 = vpop.xlane.xlu0 %1225
    %v1227 = vsel %vm94, %v1219, 0.0
    %1228 = vadd.xlane.f32.xlu0 %v1227
    %v1229 = vpop.xlane.xlu0 %1228
    %v1230 = vsel %vm94, %v1220, 0.0
    %1231 = vadd.xlane.f32.xlu0 %v1230
    %v1232 = vpop.xlane.xlu0 %1231
    %v1233 = vmul.f32 %v1223, 0.03125
    %v1234 = vmul.f32 %v1226, 0.03125
    %v1235 = vmul.f32 %v1229, 0.03125
    %v1236 = vmul.f32 %v1232, 0.03125
    %v1237 = vmul.f32 %v1233, %v1233
    %v1238 = vmul.f32 %v1234, %v1234
    %v1239 = vsub.f32 %v1235, %v1237
    %v1240 = vsub.f32 %v1236, %v1238
    %v1241 = vmax.f32 %v1239, 0.0
    %v1242 = vmax.f32 %v1240, 0.0
    %v1243 = vsub.f32 %v1211, %v1233
    %v1244 = vsub.f32 %v1216, %v1234
    %v1245 = vadd.f32 %v1241, 1e-05
    %v1246 = vadd.f32 %v1242, 1e-05
    %v1247 = vrsqrt.pop %v1245
    %v1248 = vrsqrt.pop %v1246
    %v1249 = vmul.f32 %v1243, %v1247
    %v1250 = vmul.f32 %v1244, %v1248
    %v1251 = vlaneseq
    %v1252 = vshrl.u32 %v1251, 7
    %v1253 = vsub.s32 2, %v1252
    %v1254 = vrot.slane %v1086, %v1253
    %v1255 = vmul.f32 %v1249, %v1254
    %v1256 = vmul.f32 %v1250, %v1254
    %v1257 = vlaneseq
    %v1258 = vshrl.u32 %v1257, 7
    %v1259 = vsub.s32 3, %v1258
    %v1260 = vrot.slane %v1086, %v1259
    %v1261 = vadd.f32 %v1255, %v1260
    %v1262 = vadd.f32 %v1256, %v1260
    %v1263 = vadd.f32 %v1261, %v667
    %v1264 = vadd.f32 %v1262, %v668
    %v1265 = vmax.f32 %v1263, 0.0
    %v1266 = vmax.f32 %v1264, 0.0
    %s1267 = scalar_lea.vmem [#allocation5], 448
    %v1268 = vld [vmem:[%s1267] sm:$0xff]
    %v1269 = vld [vmem:[%s1267 + $0x8] sm:$0xff]
    %v1270 = vld [vmem:[%s1267 + $0x10] sm:$0xff]
    %v1271 = vld [vmem:[%s1267 + $0x18] sm:$0xff]
    %v1272 = vld [vmem:[%s1267 + $0x20] sm:$0xff]
    %v1273 = vld [vmem:[%s1267 + $0x28] sm:$0xff]
    %v1274 = vld [vmem:[%s1267 + $0x30] sm:$0xff]
    %v1275 = vld [vmem:[%s1267 + $0x38] sm:$0xff]
    %v1276 = vld [vmem:[%s1267 + $0x40] sm:$0xff]
    %v1277 = vld [vmem:[%s1267 + $0x48] sm:$0xff]
    %v1278 = vld [vmem:[%s1267 + $0x50] sm:$0xff]
    %v1279 = vld [vmem:[%s1267 + $0x58] sm:$0xff]
    %v1280 = vld [vmem:[%s1267 + $0x60] sm:$0xff]
    %v1281 = vld [vmem:[%s1267 + $0x68] sm:$0xff]
    %v1282 = vld [vmem:[%s1267 + $0x70] sm:$0xff]
    %v1283 = vld [vmem:[%s1267 + $0x78] sm:$0xff]
    %v1284 = vld [vmem:[%s1267 + $0x80] sm:$0xff]
    %v1285 = vld [vmem:[%s1267 + $0x88] sm:$0xff]
    %v1286 = vld [vmem:[%s1267 + $0x90] sm:$0xff]
    %v1287 = vld [vmem:[%s1267 + $0x98] sm:$0xff]
    %v1288 = vld [vmem:[%s1267 + $0xa0] sm:$0xff]
    %v1289 = vld [vmem:[%s1267 + $0xa8] sm:$0xff]
    %v1290 = vld [vmem:[%s1267 + $0xb0] sm:$0xff]
    %v1291 = vld [vmem:[%s1267 + $0xb8] sm:$0xff]
    %v1292 = vld [vmem:[%s1267 + $0xc0] sm:$0xff]
    %v1293 = vld [vmem:[%s1267 + $0xc8] sm:$0xff]
    %v1294 = vld [vmem:[%s1267 + $0xd0] sm:$0xff]
    %v1295 = vld [vmem:[%s1267 + $0xd8] sm:$0xff]
    %v1297 = vsel %vm94, %v1265, 0
    %v1300 = vsel %vm94, %v1266, 0
    %1302 = vmatprep.subr.mxu0 %v1269
    %1303 = vmatpush1.msra.mxu0 %v1268
    %1304 = vmatprep.subr.mxu0 %v1276
    %1305 = vmatpush1.msra.mxu0 %v1275
    %1306 = vmatprep.subr.mxu0 %v1283
    %1307 = vmatpush1.msra.mxu0 %v1282
    %1308 = vmatprep.subr.mxu0 %v1290
    %1309 = vmatpush1.msra.mxu0 %v1289
    %1310 = vmatprep.subr.mxu0 0.0
    %1311 = vmatpush1.msra.mxu0 0.0
    %1312 = vmatprep.subr.mxu0 0.0
    %1313 = vmatpush1.msra.mxu0 0.0
    %1314 = vmatprep.subr.mxu0 0.0
    %1315 = vmatpush1.msra.mxu0 0.0
    %1316 = vmatprep.subr.mxu0 0.0
    %1317 = vmatpush1.msra.mxu0 0.0
    %1318 = vmatprep.subr.mxu0 0.0
    %1319 = vmatpush1.msra.mxu0 0.0
    %1320 = vmatprep.subr.mxu0 0.0
    %1321 = vmatpush1.msra.mxu0 0.0
    %1322 = vmatprep.subr.mxu0 0.0
    %1323 = vmatpush1.msra.mxu0 0.0
    %1324 = vmatprep.subr.mxu0 0.0
    %1325 = vmatpush1.msra.mxu0 0.0
    %1326 = vmatprep.subr.mxu0 0.0
    %1327 = vmatpush1.msra.mxu0 0.0
    %1328 = vmatprep.subr.mxu0 0.0
    %1329 = vmatpush1.msra.mxu0 0.0
    %1330 = vmatprep.subr.mxu0 0.0
    %1331 = vmatpush1.msra.mxu0 0.0
    %1332 = vmatprep.subr.mxu0 0.0
    %1333 = vmatpush1.msra.mxu0 0.0
    %1334 = vmatprep.subr.mxu0 0.0
    %1335 = vmatpush1.msra.mxu0 0.0
    %1336 = vmatprep.subr.mxu0 0.0
    %1337 = vmatpush1.msra.mxu0 0.0
    %1338 = vmatprep.subr.mxu0 0.0
    %1339 = vmatpush1.msra.mxu0 0.0
    %1340 = vmatprep.subr.mxu0 0.0
    %1341 = vmatpush1.msra.mxu0 0.0
    %1342 = vmatprep.subr.mxu0 0.0
    %1343 = vmatpush1.msra.mxu0 0.0
    %1344 = vmatprep.subr.mxu0 0.0
    %1345 = vmatpush1.msra.mxu0 0.0
    %1346 = vmatprep.subr.mxu0 0.0
    %1347 = vmatpush1.msra.mxu0 0.0
    %1348 = vmatprep.subr.mxu0 0.0
    %1349 = vmatpush1.msra.mxu0 0.0
    %1350 = vmatprep.subr.mxu0 0.0
    %1351 = vmatpush1.msra.mxu0 0.0
    %1352 = vmatprep.subr.mxu0 0.0
    %1353 = vmatpush1.msra.mxu0 0.0
    %1354 = vmatprep.subr.mxu0 0.0
    %1355 = vmatpush1.msra.mxu0 0.0
    %1356 = vmatprep.subr.mxu0 0.0
    %1357 = vmatpush1.msra.mxu0 0.0
    %1358 = vmatprep.subr.mxu0 0.0
    %1359 = vmatpush1.msra.mxu0 0.0
    %1360 = vmatprep.subr.mxu0 0.0
    %1361 = vmatpush1.msra.mxu0 0.0
    %1362 = vmatprep.subr.mxu0 0.0
    %1363 = vmatpush1.msra.mxu0 0.0
    %1364 = vmatprep.subr.mxu0 0.0
    %1365 = vmatpush1.msra.mxu0 0.0
    %1366 = vmatprep.mubr.f32.mxu0 0.0
    %1367 = vmatmul.mubr.f32.gmra.mrb[0].mxu0 %v1297
    %v1368 = vpop.f32.mrb[0].mxu0
    %v1369 = vadd.f32 0.0, %v1368
    %v1370 = vpop.f32.mrb[0].mxu0
    %v1371 = vadd.f32 0.0, %v1370
    %1372 = vmatprep.mubr.f32.mxu0 0.0
    %1373 = vmatmul.mubr.f32.gmra.mrb[0].mxu0 %v1300
    %v1374 = vpop.f32.mrb[0].mxu0
    %v1375 = vadd.f32 0.0, %v1374
    %v1376 = vpop.f32.mrb[0].mxu0
    %v1377 = vadd.f32 0.0, %v1376
    %1378 = vdwg.mxu0
    %1379 = vmatprep.subr.mxu0 %v1271
    %1380 = vmatpush1.msra.mxu0 %v1270
    %1381 = vmatprep.subr.mxu0 %v1278
    %1382 = vmatpush1.msra.mxu0 %v1277
    %1383 = vmatprep.subr.mxu0 %v1285
    %1384 = vmatpush1.msra.mxu0 %v1284
    %1385 = vmatprep.subr.mxu0 %v1292
    %1386 = vmatpush1.msra.mxu0 %v1291
    %1387 = vmatprep.subr.mxu0 0.0
    %1388 = vmatpush1.msra.mxu0 0.0
    %1389 = vmatprep.subr.mxu0 0.0
    %1390 = vmatpush1.msra.mxu0 0.0
    %1391 = vmatprep.subr.mxu0 0.0
    %1392 = vmatpush1.msra.mxu0 0.0
    %1393 = vmatprep.subr.mxu0 0.0
    %1394 = vmatpush1.msra.mxu0 0.0
    %1395 = vmatprep.subr.mxu0 0.0
    %1396 = vmatpush1.msra.mxu0 0.0
    %1397 = vmatprep.subr.mxu0 0.0
    %1398 = vmatpush1.msra.mxu0 0.0
    %1399 = vmatprep.subr.mxu0 0.0
    %1400 = vmatpush1.msra.mxu0 0.0
    %1401 = vmatprep.subr.mxu0 0.0
    %1402 = vmatpush1.msra.mxu0 0.0
    %1403 = vmatprep.subr.mxu0 0.0
    %1404 = vmatpush1.msra.mxu0 0.0
    %1405 = vmatprep.subr.mxu0 0.0
    %1406 = vmatpush1.msra.mxu0 0.0
    %1407 = vmatprep.subr.mxu0 0.0
    %1408 = vmatpush1.msra.mxu0 0.0
    %1409 = vmatprep.subr.mxu0 0.0
    %1410 = vmatpush1.msra.mxu0 0.0
    %1411 = vmatprep.subr.mxu0 0.0
    %1412 = vmatpush1.msra.mxu0 0.0
    %1413 = vmatprep.subr.mxu0 0.0
    %1414 = vmatpush1.msra.mxu0 0.0
    %1415 = vmatprep.subr.mxu0 0.0
    %1416 = vmatpush1.msra.mxu0 0.0
    %1417 = vmatprep.subr.mxu0 0.0
    %1418 = vmatpush1.msra.mxu0 0.0
    %1419 = vmatprep.subr.mxu0 0.0
    %1420 = vmatpush1.msra.mxu0 0.0
    %1421 = vmatprep.subr.mxu0 0.0
    %1422 = vmatpush1.msra.mxu0 0.0
    %1423 = vmatprep.subr.mxu0 0.0
    %1424 = vmatpush1.msra.mxu0 0.0
    %1425 = vmatprep.subr.mxu0 0.0
    %1426 = vmatpush1.msra.mxu0 0.0
    %1427 = vmatprep.subr.mxu0 0.0
    %1428 = vmatpush1.msra.mxu0 0.0
    %1429 = vmatprep.subr.mxu0 0.0
    %1430 = vmatpush1.msra.mxu0 0.0
    %1431 = vmatprep.subr.mxu0 0.0
    %1432 = vmatpush1.msra.mxu0 0.0
    %1433 = vmatprep.subr.mxu0 0.0
    %1434 = vmatpush1.msra.mxu0 0.0
    %1435 = vmatprep.subr.mxu0 0.0
    %1436 = vmatpush1.msra.mxu0 0.0
    %1437 = vmatprep.subr.mxu0 0.0
    %1438 = vmatpush1.msra.mxu0 0.0
    %1439 = vmatprep.subr.mxu0 0.0
    %1440 = vmatpush1.msra.mxu0 0.0
    %1441 = vmatprep.subr.mxu0 0.0
    %1442 = vmatpush1.msra.mxu0 0.0
    %1443 = vmatprep.mubr.f32.mxu0 0.0
    %1444 = vmatmul.mubr.f32.gmra.mrb[0].mxu0 %v1297
    %v1445 = vpop.f32.mrb[0].mxu0
    %v1446 = vadd.f32 0.0, %v1445
    %v1447 = vpop.f32.mrb[0].mxu0
    %v1448 = vadd.f32 0.0, %v1447
    %1449 = vmatprep.mubr.f32.mxu0 0.0
    %1450 = vmatmul.mubr.f32.gmra.mrb[0].mxu0 %v1300
    %v1451 = vpop.f32.mrb[0].mxu0
    %v1452 = vadd.f32 0.0, %v1451
    %v1453 = vpop.f32.mrb[0].mxu0
    %v1454 = vadd.f32 0.0, %v1453
    %1455 = vdwg.mxu0
    %1456 = vmatprep.subr.mxu0 %v1273
    %1457 = vmatpush1.msra.mxu0 %v1272
    %1458 = vmatprep.subr.mxu0 %v1280
    %1459 = vmatpush1.msra.mxu0 %v1279
    %1460 = vmatprep.subr.mxu0 %v1287
    %1461 = vmatpush1.msra.mxu0 %v1286
    %1462 = vmatprep.subr.mxu0 %v1294
    %1463 = vmatpush1.msra.mxu0 %v1293
    %1464 = vmatprep.subr.mxu0 0.0
    %1465 = vmatpush1.msra.mxu0 0.0
    %1466 = vmatprep.subr.mxu0 0.0
    %1467 = vmatpush1.msra.mxu0 0.0
    %1468 = vmatprep.subr.mxu0 0.0
    %1469 = vmatpush1.msra.mxu0 0.0
    %1470 = vmatprep.subr.mxu0 0.0
    %1471 = vmatpush1.msra.mxu0 0.0
    %1472 = vmatprep.subr.mxu0 0.0
    %1473 = vmatpush1.msra.mxu0 0.0
    %1474 = vmatprep.subr.mxu0 0.0
    %1475 = vmatpush1.msra.mxu0 0.0
    %1476 = vmatprep.subr.mxu0 0.0
    %1477 = vmatpush1.msra.mxu0 0.0
    %1478 = vmatprep.subr.mxu0 0.0
    %1479 = vmatpush1.msra.mxu0 0.0
    %1480 = vmatprep.subr.mxu0 0.0
    %1481 = vmatpush1.msra.mxu0 0.0
    %1482 = vmatprep.subr.mxu0 0.0
    %1483 = vmatpush1.msra.mxu0 0.0
    %1484 = vmatprep.subr.mxu0 0.0
    %1485 = vmatpush1.msra.mxu0 0.0
    %1486 = vmatprep.subr.mxu0 0.0
    %1487 = vmatpush1.msra.mxu0 0.0
    %1488 = vmatprep.subr.mxu0 0.0
    %1489 = vmatpush1.msra.mxu0 0.0
    %1490 = vmatprep.subr.mxu0 0.0
    %1491 = vmatpush1.msra.mxu0 0.0
    %1492 = vmatprep.subr.mxu0 0.0
    %1493 = vmatpush1.msra.mxu0 0.0
    %1494 = vmatprep.subr.mxu0 0.0
    %1495 = vmatpush1.msra.mxu0 0.0
    %1496 = vmatprep.subr.mxu0 0.0
    %1497 = vmatpush1.msra.mxu0 0.0
    %1498 = vmatprep.subr.mxu0 0.0
    %1499 = vmatpush1.msra.mxu0 0.0
    %1500 = vmatprep.subr.mxu0 0.0
    %1501 = vmatpush1.msra.mxu0 0.0
    %1502 = vmatprep.subr.mxu0 0.0
    %1503 = vmatpush1.msra.mxu0 0.0
    %1504 = vmatprep.subr.mxu0 0.0
    %1505 = vmatpush1.msra.mxu0 0.0
    %1506 = vmatprep.subr.mxu0 0.0
    %1507 = vmatpush1.msra.mxu0 0.0
    %1508 = vmatprep.subr.mxu0 0.0
    %1509 = vmatpush1.msra.mxu0 0.0
    %1510 = vmatprep.subr.mxu0 0.0
    %1511 = vmatpush1.msra.mxu0 0.0
    %1512 = vmatprep.subr.mxu0 0.0
    %1513 = vmatpush1.msra.mxu0 0.0
    %1514 = vmatprep.subr.mxu0 0.0
    %1515 = vmatpush1.msra.mxu0 0.0
    %1516 = vmatprep.subr.mxu0 0.0
    %1517 = vmatpush1.msra.mxu0 0.0
    %1518 = vmatprep.subr.mxu0 0.0
    %1519 = vmatpush1.msra.mxu0 0.0
    %1520 = vmatprep.mubr.f32.mxu0 0.0
    %1521 = vmatmul.mubr.f32.gmra.mrb[0].mxu0 %v1297
    %v1522 = vpop.f32.mrb[0].mxu0
    %v1523 = vadd.f32 0.0, %v1522
    %v1524 = vpop.f32.mrb[0].mxu0
    %v1525 = vadd.f32 0.0, %v1524
    %1526 = vmatprep.mubr.f32.mxu0 0.0
    %1527 = vmatmul.mubr.f32.gmra.mrb[0].mxu0 %v1300
    %v1528 = vpop.f32.mrb[0].mxu0
    %v1529 = vadd.f32 0.0, %v1528
    %v1530 = vpop.f32.mrb[0].mxu0
    %v1531 = vadd.f32 0.0, %v1530
    %1532 = vdwg.mxu0
    %1533 = vmatprep.subr.mxu0 0.0
    %1534 = vmatpush1.msra.mxu0 %v1274
    %1535 = vmatprep.subr.mxu0 0.0
    %1536 = vmatpush1.msra.mxu0 %v1281
    %1537 = vmatprep.subr.mxu0 0.0
    %1538 = vmatpush1.msra.mxu0 %v1288
    %1539 = vmatprep.subr.mxu0 0.0
    %1540 = vmatpush1.msra.mxu0 %v1295
    %1541 = vmatprep.subr.mxu0 0.0
    %1542 = vmatpush1.msra.mxu0 0.0
    %1543 = vmatprep.subr.mxu0 0.0
    %1544 = vmatpush1.msra.mxu0 0.0
    %1545 = vmatprep.subr.mxu0 0.0
    %1546 = vmatpush1.msra.mxu0 0.0
    %1547 = vmatprep.subr.mxu0 0.0
    %1548 = vmatpush1.msra.mxu0 0.0
    %1549 = vmatprep.subr.mxu0 0.0
    %1550 = vmatpush1.msra.mxu0 0.0
    %1551 = vmatprep.subr.mxu0 0.0
    %1552 = vmatpush1.msra.mxu0 0.0
    %1553 = vmatprep.subr.mxu0 0.0
    %1554 = vmatpush1.msra.mxu0 0.0
    %1555 = vmatprep.subr.mxu0 0.0
    %1556 = vmatpush1.msra.mxu0 0.0
    %1557 = vmatprep.subr.mxu0 0.0
    %1558 = vmatpush1.msra.mxu0 0.0
    %1559 = vmatprep.subr.mxu0 0.0
    %1560 = vmatpush1.msra.mxu0 0.0
    %1561 = vmatprep.subr.mxu0 0.0
    %1562 = vmatpush1.msra.mxu0 0.0
    %1563 = vmatprep.subr.mxu0 0.0
    %1564 = vmatpush1.msra.mxu0 0.0
    %1565 = vmatprep.subr.mxu0 0.0
    %1566 = vmatpush1.msra.mxu0 0.0
    %1567 = vmatprep.subr.mxu0 0.0
    %1568 = vmatpush1.msra.mxu0 0.0
    %1569 = vmatprep.subr.mxu0 0.0
    %1570 = vmatpush1.msra.mxu0 0.0
    %1571 = vmatprep.subr.mxu0 0.0
    %1572 = vmatpush1.msra.mxu0 0.0
    %1573 = vmatprep.subr.mxu0 0.0
    %1574 = vmatpush1.msra.mxu0 0.0
    %1575 = vmatprep.subr.mxu0 0.0
    %1576 = vmatpush1.msra.mxu0 0.0
    %1577 = vmatprep.subr.mxu0 0.0
    %1578 = vmatpush1.msra.mxu0 0.0
    %1579 = vmatprep.subr.mxu0 0.0
    %1580 = vmatpush1.msra.mxu0 0.0
    %1581 = vmatprep.subr.mxu0 0.0
    %1582 = vmatpush1.msra.mxu0 0.0
    %1583 = vmatprep.subr.mxu0 0.0
    %1584 = vmatpush1.msra.mxu0 0.0
    %1585 = vmatprep.subr.mxu0 0.0
    %1586 = vmatpush1.msra.mxu0 0.0
    %1587 = vmatprep.subr.mxu0 0.0
    %1588 = vmatpush1.msra.mxu0 0.0
    %1589 = vmatprep.subr.mxu0 0.0
    %1590 = vmatpush1.msra.mxu0 0.0
    %1591 = vmatprep.subr.mxu0 0.0
    %1592 = vmatpush1.msra.mxu0 0.0
    %1593 = vmatprep.subr.mxu0 0.0
    %1594 = vmatpush1.msra.mxu0 0.0
    %1595 = vmatprep.subr.mxu0 0.0
    %1596 = vmatpush1.msra.mxu0 0.0
    %1597 = vmatprep.mubr.f32.mxu0 0.0
    %1598 = vmatmul.mubr.f32.gmra.mrb[0].mxu0 %v1297
    %v1599 = vpop.f32.mrb[0].mxu0
    %v1600 = vadd.f32 0.0, %v1599
    %v1601 = vpop.f32.mrb[0].mxu0
    %1602 = vmatprep.mubr.f32.mxu0 0.0
    %1603 = vmatmul.mubr.f32.gmra.mrb[0].mxu0 %v1300
    %v1604 = vpop.f32.mrb[0].mxu0
    %v1605 = vadd.f32 0.0, %v1604
    %v1606 = vpop.f32.mrb[0].mxu0
    %1607 = vdwg.mxu0
    %1608 = vmatprep.subr.mxu0 0.0
    %1609 = vmatpush1.msra.mxu0 %v1369
    %1610 = vmatprep.subr.mxu0 0.0
    %1611 = vmatpush1.msra.mxu0 %v1375
    %1612 = vmatprep.subr.mxu0 0.0
    %1613 = vmatpush1.msra.mxu0 %v1371
    %1614 = vmatprep.subr.mxu0 0.0
    %1615 = vmatpush1.msra.mxu0 %v1377
    %1616 = vmatprep.subr.mxu0 0.0
    %1617 = vmatpush1.msra.mxu0 %v1446
    %1618 = vmatprep.subr.mxu0 0.0
    %1619 = vmatpush1.msra.mxu0 %v1452
    %1620 = vmatprep.subr.mxu0 0.0
    %1621 = vmatpush1.msra.mxu0 %v1448
    %1622 = vmatprep.subr.mxu0 0.0
    %1623 = vmatpush1.msra.mxu0 %v1454
    %1624 = vmatprep.subr.mxu0 0.0
    %1625 = vmatpush1.msra.mxu0 %v1523
    %1626 = vmatprep.subr.mxu0 0.0
    %1627 = vmatpush1.msra.mxu0 %v1529
    %1628 = vmatprep.subr.mxu0 0.0
    %1629 = vmatpush1.msra.mxu0 %v1525
    %1630 = vmatprep.subr.mxu0 0.0
    %1631 = vmatpush1.msra.mxu0 %v1531
    %1632 = vmatprep.subr.mxu0 0.0
    %1633 = vmatpush1.msra.mxu0 %v1600
    %1634 = vmatprep.subr.mxu0 0.0
    %1635 = vmatpush1.msra.mxu0 %v1605
    %1636 = vmatprep.subr.mxu0 0.0
    %1637 = vmatpush1.msra.mxu0 0.0
    %1638 = vmatprep.subr.mxu0 0.0
    %1639 = vmatpush1.msra.mxu0 0.0
    %1640 = vmatprep.subr.mxu0 0.0
    %1641 = vmatpush1.msra.mxu0 0.0
    %1642 = vmatprep.subr.mxu0 0.0
    %1643 = vmatpush1.msra.mxu0 0.0
    %1644 = vmatprep.subr.mxu0 0.0
    %1645 = vmatpush1.msra.mxu0 0.0
    %1646 = vmatprep.subr.mxu0 0.0
    %1647 = vmatpush1.msra.mxu0 0.0
    %1648 = vmatprep.subr.mxu0 0.0
    %1649 = vmatpush1.msra.mxu0 0.0
    %1650 = vmatprep.subr.mxu0 0.0
    %1651 = vmatpush1.msra.mxu0 0.0
    %1652 = vmatprep.subr.mxu0 0.0
    %1653 = vmatpush1.msra.mxu0 0.0
    %1654 = vmatprep.subr.mxu0 0.0
    %1655 = vmatpush1.msra.mxu0 0.0
    %1656 = vmatprep.subr.mxu0 0.0
    %1657 = vmatpush1.msra.mxu0 0.0
    %1658 = vmatprep.subr.mxu0 0.0
    %1659 = vmatpush1.msra.mxu0 0.0
    %1660 = vmatprep.subr.mxu0 0.0
    %1661 = vmatpush1.msra.mxu0 0.0
    %1662 = vmatprep.subr.mxu0 0.0
    %1663 = vmatpush1.msra.mxu0 0.0
    %1664 = vmatprep.subr.mxu0 0.0
    %1665 = vmatpush1.msra.mxu0 0.0
    %1666 = vmatprep.subr.mxu0 0.0
    %1667 = vmatpush1.msra.mxu0 0.0
    %1668 = vmatprep.subr.mxu0 0.0
    %1669 = vmatpush1.msra.mxu0 0.0
    %1670 = vmatprep.subr.mxu0 0.0
    %1671 = vmatpush1.msra.mxu0 0.0
    %1672 = vmatprep.mubr.f32.mxu0 0.0
    %1673 = vmatmul.mubr.f32.gmra.mrb[0].mxu0 %v409
    %v1674 = vpop.f32.mrb[0].mxu0
    %v1675 = vadd.f32 0.0, %v1674
    %v1676 = vpop.f32.mrb[0].mxu0
    %1677 = vmatprep.mubr.f32.mxu0 0.0
    %1678 = vmatmul.mubr.f32.gmra.mrb[0].mxu0 %v412
    %v1679 = vpop.f32.mrb[0].mxu0
    %v1680 = vadd.f32 0.0, %v1679
    %v1681 = vpop.f32.mrb[0].mxu0
    %1682 = vdwg.mxu0
    %s1683 = scalar_lea.vmem %s4, 8
    %v1684 = vld [vmem:[%s1683] sm:$0xf]
    %v1685 = vmul.f32 %v1675, %v1675
    %v1686 = vmul.f32 %v1680, %v1680
    %v1687 = vsel %vm94, %v1675, 0.0
    %1688 = vadd.xlane.f32.xlu0 %v1687
    %v1689 = vpop.xlane.xlu0 %1688
    %v1690 = vsel %vm94, %v1680, 0.0
    %1691 = vadd.xlane.f32.xlu0 %v1690
    %v1692 = vpop.xlane.xlu0 %1691
    %v1693 = vsel %vm94, %v1685, 0.0
    %1694 = vadd.xlane.f32.xlu0 %v1693
    %v1695 = vpop.xlane.xlu0 %1694
    %v1696 = vsel %vm94, %v1686, 0.0
    %1697 = vadd.xlane.f32.xlu0 %v1696
    %v1698 = vpop.xlane.xlu0 %1697
    %v1699 = vmul.f32 %v1689, 0.03125
    %v1700 = vmul.f32 %v1692, 0.03125
    %v1701 = vmul.f32 %v1695, 0.03125
    %v1702 = vmul.f32 %v1698, 0.03125
    %v1703 = vmul.f32 %v1699, %v1699
    %v1704 = vmul.f32 %v1700, %v1700
    %v1705 = vsub.f32 %v1701, %v1703
    %v1706 = vsub.f32 %v1702, %v1704
    %v1707 = vmax.f32 %v1705, 0.0
    %v1708 = vmax.f32 %v1706, 0.0
    %v1709 = vsub.f32 %v1675, %v1699
    %v1710 = vsub.f32 %v1680, %v1700
    %v1711 = vadd.f32 %v1707, 1e-05
    %v1712 = vadd.f32 %v1708, 1e-05
    %v1713 = vrsqrt.pop %v1711
    %v1714 = vrsqrt.pop %v1712
    %v1715 = vmul.f32 %v1709, %v1713
    %v1716 = vmul.f32 %v1710, %v1714
    %v1717 = vlaneseq
    %v1718 = vshrl.u32 %v1717, 7
    %v1719 = vsub.s32 0, %v1718
    %v1720 = vrot.slane %v1684, %v1719
    %v1721 = vmul.f32 %v1715, %v1720
    %v1722 = vmul.f32 %v1716, %v1720
    %v1723 = vlaneseq
    %v1724 = vshrl.u32 %v1723, 7
    %v1725 = vsub.s32 1, %v1724
    %v1726 = vrot.slane %v1684, %v1725
    %v1727 = vadd.f32 %v1721, %v1726
    %v1728 = vadd.f32 %v1722, %v1726
    %v1729 = vmax.f32 %v1727, 0.0
    %v1730 = vmax.f32 %v1728, 0.0
    %s1731 = scalar_lea.vmem [#allocation7], 64
    %v1732 = vld [vmem:[%s1731] sm:$0xff]
    %v1733 = vld [vmem:[%s1731 + $0x8] sm:$0xff]
    %v1734 = vld [vmem:[%s1731 + $0x10] sm:$0xff]
    %v1735 = vld [vmem:[%s1731 + $0x18] sm:$0xff]
    %v1737 = vsel %vm94, %v1729, 0
    %v1740 = vsel %vm94, %v1730, 0
    %1742 = vmatprep.subr.mxu0 0.0
    %1743 = vmatpush1.msra.mxu0 %v1732
    %1744 = vmatprep.subr.mxu0 0.0
    %1745 = vmatpush1.msra.mxu0 %v1733
    %1746 = vmatprep.subr.mxu0 0.0
    %1747 = vmatpush1.msra.mxu0 %v1734
    %1748 = vmatprep.subr.mxu0 0.0
    %1749 = vmatpush1.msra.mxu0 %v1735
    %1750 = vmatprep.subr.mxu0 0.0
    %1751 = vmatpush1.msra.mxu0 0.0
    %1752 = vmatprep.subr.mxu0 0.0
    %1753 = vmatpush1.msra.mxu0 0.0
    %1754 = vmatprep.subr.mxu0 0.0
    %1755 = vmatpush1.msra.mxu0 0.0
    %1756 = vmatprep.subr.mxu0 0.0
    %1757 = vmatpush1.msra.mxu0 0.0
    %1758 = vmatprep.subr.mxu0 0.0
    %1759 = vmatpush1.msra.mxu0 0.0
    %1760 = vmatprep.subr.mxu0 0.0
    %1761 = vmatpush1.msra.mxu0 0.0
    %1762 = vmatprep.subr.mxu0 0.0
    %1763 = vmatpush1.msra.mxu0 0.0
    %1764 = vmatprep.subr.mxu0 0.0
    %1765 = vmatpush1.msra.mxu0 0.0
    %1766 = vmatprep.subr.mxu0 0.0
    %1767 = vmatpush1.msra.mxu0 0.0
    %1768 = vmatprep.subr.mxu0 0.0
    %1769 = vmatpush1.msra.mxu0 0.0
    %1770 = vmatprep.subr.mxu0 0.0
    %1771 = vmatpush1.msra.mxu0 0.0
    %1772 = vmatprep.subr.mxu0 0.0
    %1773 = vmatpush1.msra.mxu0 0.0
    %1774 = vmatprep.subr.mxu0 0.0
    %1775 = vmatpush1.msra.mxu0 0.0
    %1776 = vmatprep.subr.mxu0 0.0
    %1777 = vmatpush1.msra.mxu0 0.0
    %1778 = vmatprep.subr.mxu0 0.0
    %1779 = vmatpush1.msra.mxu0 0.0
    %1780 = vmatprep.subr.mxu0 0.0
    %1781 = vmatpush1.msra.mxu0 0.0
    %1782 = vmatprep.subr.mxu0 0.0
    %1783 = vmatpush1.msra.mxu0 0.0
    %1784 = vmatprep.subr.mxu0 0.0
    %1785 = vmatpush1.msra.mxu0 0.0
    %1786 = vmatprep.subr.mxu0 0.0
    %1787 = vmatpush1.msra.mxu0 0.0
    %1788 = vmatprep.subr.mxu0 0.0
    %1789 = vmatpush1.msra.mxu0 0.0
    %1790 = vmatprep.subr.mxu0 0.0
    %1791 = vmatpush1.msra.mxu0 0.0
    %1792 = vmatprep.subr.mxu0 0.0
    %1793 = vmatpush1.msra.mxu0 0.0
    %1794 = vmatprep.subr.mxu0 0.0
    %1795 = vmatpush1.msra.mxu0 0.0
    %1796 = vmatprep.subr.mxu0 0.0
    %1797 = vmatpush1.msra.mxu0 0.0
    %1798 = vmatprep.subr.mxu0 0.0
    %1799 = vmatpush1.msra.mxu0 0.0
    %1800 = vmatprep.subr.mxu0 0.0
    %1801 = vmatpush1.msra.mxu0 0.0
    %1802 = vmatprep.subr.mxu0 0.0
    %1803 = vmatpush1.msra.mxu0 0.0
    %1804 = vmatprep.subr.mxu0 0.0
    %1805 = vmatpush1.msra.mxu0 0.0
    %1806 = vmatprep.mubr.f32.mxu0 0.0
    %1807 = vmatmul.mubr.f32.gmra.mrb[0].mxu0 %v1737
    %v1808 = vpop.f32.mrb[0].mxu0
    %v1809 = vadd.f32 0.0, %v1808
    %v1810 = vpop.f32.mrb[0].mxu0
    %1811 = vmatprep.mubr.f32.mxu0 0.0
    %1812 = vmatmul.mubr.f32.gmra.mrb[0].mxu0 %v1740
    %v1813 = vpop.f32.mrb[0].mxu0
    %v1814 = vadd.f32 0.0, %v1813
    %v1815 = vpop.f32.mrb[0].mxu0
    %1816 = vdwg.mxu0
    %v1817 = vmul.f32 %v1809, %v1809
    %v1818 = vmul.f32 %v1814, %v1814
    %v1819 = vsel %vm94, %v1809, 0.0
    %1820 = vadd.xlane.f32.xlu0 %v1819
    %v1821 = vpop.xlane.xlu0 %1820
    %v1822 = vsel %vm94, %v1814, 0.0
    %1823 = vadd.xlane.f32.xlu0 %v1822
    %v1824 = vpop.xlane.xlu0 %1823
    %v1825 = vsel %vm94, %v1817, 0.0
    %1826 = vadd.xlane.f32.xlu0 %v1825
    %v1827 = vpop.xlane.xlu0 %1826
    %v1828 = vsel %vm94, %v1818, 0.0
    %1829 = vadd.xlane.f32.xlu0 %v1828
    %v1830 = vpop.xlane.xlu0 %1829
    %v1831 = vmul.f32 %v1821, 0.03125
    %v1832 = vmul.f32 %v1824, 0.03125
    %v1833 = vmul.f32 %v1827, 0.03125
    %v1834 = vmul.f32 %v1830, 0.03125
    %v1835 = vmul.f32 %v1831, %v1831
    %v1836 = vmul.f32 %v1832, %v1832
    %v1837 = vsub.f32 %v1833, %v1835
    %v1838 = vsub.f32 %v1834, %v1836
    %v1839 = vmax.f32 %v1837, 0.0
    %v1840 = vmax.f32 %v1838, 0.0
    %v1841 = vsub.f32 %v1809, %v1831
    %v1842 = vsub.f32 %v1814, %v1832
    %v1843 = vadd.f32 %v1839, 1e-05
    %v1844 = vadd.f32 %v1840, 1e-05
    %v1845 = vrsqrt.pop %v1843
    %v1846 = vrsqrt.pop %v1844
    %v1847 = vmul.f32 %v1841, %v1845
    %v1848 = vmul.f32 %v1842, %v1846
    %v1849 = vlaneseq
    %v1850 = vshrl.u32 %v1849, 7
    %v1851 = vsub.s32 2, %v1850
    %v1852 = vrot.slane %v1684, %v1851
    %v1853 = vmul.f32 %v1847, %v1852
    %v1854 = vmul.f32 %v1848, %v1852
    %v1855 = vlaneseq
    %v1856 = vshrl.u32 %v1855, 7
    %v1857 = vsub.s32 3, %v1856
    %v1858 = vrot.slane %v1684, %v1857
    %v1859 = vadd.f32 %v1853, %v1858
    %v1860 = vadd.f32 %v1854, %v1858
    %v1861 = vadd.f32 %v1859, %v1265
    %v1862 = vadd.f32 %v1860, %v1266
    %v1863 = vmax.f32 %v1861, 0.0
    %v1864 = vmax.f32 %v1862, 0.0
    %s1865 = scalar_lea.vmem [#allocation5], 672
    %v1866 = vld [vmem:[%s1865] sm:$0xff]
    %v1867 = vld [vmem:[%s1865 + $0x8] sm:$0xff]
    %v1868 = vld [vmem:[%s1865 + $0x10] sm:$0xff]
    %v1869 = vld [vmem:[%s1865 + $0x18] sm:$0xff]
    %v1870 = vld [vmem:[%s1865 + $0x20] sm:$0xff]
    %v1871 = vld [vmem:[%s1865 + $0x28] sm:$0xff]
    %v1872 = vld [vmem:[%s1865 + $0x30] sm:$0xff]
    %v1873 = vld [vmem:[%s1865 + $0x38] sm:$0xff]
    %v1874 = vld [vmem:[%s1865 + $0x40] sm:$0xff]
    %v1875 = vld [vmem:[%s1865 + $0x48] sm:$0xff]
    %v1876 = vld [vmem:[%s1865 + $0x50] sm:$0xff]
    %v1877 = vld [vmem:[%s1865 + $0x58] sm:$0xff]
    %v1878 = vld [vmem:[%s1865 + $0x60] sm:$0xff]
    %v1879 = vld [vmem:[%s1865 + $0x68] sm:$0xff]
    %v1880 = vld [vmem:[%s1865 + $0x70] sm:$0xff]
    %v1881 = vld [vmem:[%s1865 + $0x78] sm:$0xff]
    %v1882 = vld [vmem:[%s1865 + $0x80] sm:$0xff]
    %v1883 = vld [vmem:[%s1865 + $0x88] sm:$0xff]
    %v1884 = vld [vmem:[%s1865 + $0x90] sm:$0xff]
    %v1885 = vld [vmem:[%s1865 + $0x98] sm:$0xff]
    %v1886 = vld [vmem:[%s1865 + $0xa0] sm:$0xff]
    %v1887 = vld [vmem:[%s1865 + $0xa8] sm:$0xff]
    %v1888 = vld [vmem:[%s1865 + $0xb0] sm:$0xff]
    %v1889 = vld [vmem:[%s1865 + $0xb8] sm:$0xff]
    %v1890 = vld [vmem:[%s1865 + $0xc0] sm:$0xff]
    %v1891 = vld [vmem:[%s1865 + $0xc8] sm:$0xff]
    %v1892 = vld [vmem:[%s1865 + $0xd0] sm:$0xff]
    %v1893 = vld [vmem:[%s1865 + $0xd8] sm:$0xff]
    %v1895 = vsel %vm94, %v1863, 0
    %v1898 = vsel %vm94, %v1864, 0
    %1900 = vmatprep.subr.mxu0 %v1867
    %1901 = vmatpush1.msra.mxu0 %v1866
    %1902 = vmatprep.subr.mxu0 %v1874
    %1903 = vmatpush1.msra.mxu0 %v1873
    %1904 = vmatprep.subr.mxu0 %v1881
    %1905 = vmatpush1.msra.mxu0 %v1880
    %1906 = vmatprep.subr.mxu0 %v1888
    %1907 = vmatpush1.msra.mxu0 %v1887
    %1908 = vmatprep.subr.mxu0 0.0
    %1909 = vmatpush1.msra.mxu0 0.0
    %1910 = vmatprep.subr.mxu0 0.0
    %1911 = vmatpush1.msra.mxu0 0.0
    %1912 = vmatprep.subr.mxu0 0.0
    %1913 = vmatpush1.msra.mxu0 0.0
    %1914 = vmatprep.subr.mxu0 0.0
    %1915 = vmatpush1.msra.mxu0 0.0
    %1916 = vmatprep.subr.mxu0 0.0
    %1917 = vmatpush1.msra.mxu0 0.0
    %1918 = vmatprep.subr.mxu0 0.0
    %1919 = vmatpush1.msra.mxu0 0.0
    %1920 = vmatprep.subr.mxu0 0.0
    %1921 = vmatpush1.msra.mxu0 0.0
    %1922 = vmatprep.subr.mxu0 0.0
    %1923 = vmatpush1.msra.mxu0 0.0
    %1924 = vmatprep.subr.mxu0 0.0
    %1925 = vmatpush1.msra.mxu0 0.0
    %1926 = vmatprep.subr.mxu0 0.0
    %1927 = vmatpush1.msra.mxu0 0.0
    %1928 = vmatprep.subr.mxu0 0.0
    %1929 = vmatpush1.msra.mxu0 0.0
    %1930 = vmatprep.subr.mxu0 0.0
    %1931 = vmatpush1.msra.mxu0 0.0
    %1932 = vmatprep.subr.mxu0 0.0
    %1933 = vmatpush1.msra.mxu0 0.0
    %1934 = vmatprep.subr.mxu0 0.0
    %1935 = vmatpush1.msra.mxu0 0.0
    %1936 = vmatprep.subr.mxu0 0.0
    %1937 = vmatpush1.msra.mxu0 0.0
    %1938 = vmatprep.subr.mxu0 0.0
    %1939 = vmatpush1.msra.mxu0 0.0
    %1940 = vmatprep.subr.mxu0 0.0
    %1941 = vmatpush1.msra.mxu0 0.0
    %1942 = vmatprep.subr.mxu0 0.0
    %1943 = vmatpush1.msra.mxu0 0.0
    %1944 = vmatprep.subr.mxu0 0.0
    %1945 = vmatpush1.msra.mxu0 0.0
    %1946 = vmatprep.subr.mxu0 0.0
    %1947 = vmatpush1.msra.mxu0 0.0
    %1948 = vmatprep.subr.mxu0 0.0
    %1949 = vmatpush1.msra.mxu0 0.0
    %1950 = vmatprep.subr.mxu0 0.0
    %1951 = vmatpush1.msra.mxu0 0.0
    %1952 = vmatprep.subr.mxu0 0.0
    %1953 = vmatpush1.msra.mxu0 0.0
    %1954 = vmatprep.subr.mxu0 0.0
    %1955 = vmatpush1.msra.mxu0 0.0
    %1956 = vmatprep.subr.mxu0 0.0
    %1957 = vmatpush1.msra.mxu0 0.0
    %1958 = vmatprep.subr.mxu0 0.0
    %1959 = vmatpush1.msra.mxu0 0.0
    %1960 = vmatprep.subr.mxu0 0.0
    %1961 = vmatpush1.msra.mxu0 0.0
    %1962 = vmatprep.subr.mxu0 0.0
    %1963 = vmatpush1.msra.mxu0 0.0
    %1964 = vmatprep.mubr.f32.mxu0 0.0
    %1965 = vmatmul.mubr.f32.gmra.mrb[0].mxu0 %v1895
    %v1966 = vpop.f32.mrb[0].mxu0
    %v1967 = vadd.f32 0.0, %v1966
    %v1968 = vpop.f32.mrb[0].mxu0
    %v1969 = vadd.f32 0.0, %v1968
    %1970 = vmatprep.mubr.f32.mxu0 0.0
    %1971 = vmatmul.mubr.f32.gmra.mrb[0].mxu0 %v1898
    %v1972 = vpop.f32.mrb[0].mxu0
    %v1973 = vadd.f32 0.0, %v1972
    %v1974 = vpop.f32.mrb[0].mxu0
    %v1975 = vadd.f32 0.0, %v1974
    %1976 = vdwg.mxu0
    %1977 = vmatprep.subr.mxu0 %v1869
    %1978 = vmatpush1.msra.mxu0 %v1868
    %1979 = vmatprep.subr.mxu0 %v1876
    %1980 = vmatpush1.msra.mxu0 %v1875
    %1981 = vmatprep.subr.mxu0 %v1883
    %1982 = vmatpush1.msra.mxu0 %v1882
    %1983 = vmatprep.subr.mxu0 %v1890
    %1984 = vmatpush1.msra.mxu0 %v1889
    %1985 = vmatprep.subr.mxu0 0.0
    %1986 = vmatpush1.msra.mxu0 0.0
    %1987 = vmatprep.subr.mxu0 0.0
    %1988 = vmatpush1.msra.mxu0 0.0
    %1989 = vmatprep.subr.mxu0 0.0
    %1990 = vmatpush1.msra.mxu0 0.0
    %1991 = vmatprep.subr.mxu0 0.0
    %1992 = vmatpush1.msra.mxu0 0.0
    %1993 = vmatprep.subr.mxu0 0.0
    %1994 = vmatpush1.msra.mxu0 0.0
    %1995 = vmatprep.subr.mxu0 0.0
    %1996 = vmatpush1.msra.mxu0 0.0
    %1997 = vmatprep.subr.mxu0 0.0
    %1998 = vmatpush1.msra.mxu0 0.0
    %1999 = vmatprep.subr.mxu0 0.0
    %2000 = vmatpush1.msra.mxu0 0.0
    %2001 = vmatprep.subr.mxu0 0.0
    %2002 = vmatpush1.msra.mxu0 0.0
    %2003 = vmatprep.subr.mxu0 0.0
    %2004 = vmatpush1.msra.mxu0 0.0
    %2005 = vmatprep.subr.mxu0 0.0
    %2006 = vmatpush1.msra.mxu0 0.0
    %2007 = vmatprep.subr.mxu0 0.0
    %2008 = vmatpush1.msra.mxu0 0.0
    %2009 = vmatprep.subr.mxu0 0.0
    %2010 = vmatpush1.msra.mxu0 0.0
    %2011 = vmatprep.subr.mxu0 0.0
    %2012 = vmatpush1.msra.mxu0 0.0
    %2013 = vmatprep.subr.mxu0 0.0
    %2014 = vmatpush1.msra.mxu0 0.0
    %2015 = vmatprep.subr.mxu0 0.0
    %2016 = vmatpush1.msra.mxu0 0.0
    %2017 = vmatprep.subr.mxu0 0.0
    %2018 = vmatpush1.msra.mxu0 0.0
    %2019 = vmatprep.subr.mxu0 0.0
    %2020 = vmatpush1.msra.mxu0 0.0
    %2021 = vmatprep.subr.mxu0 0.0
    %2022 = vmatpush1.msra.mxu0 0.0
    %2023 = vmatprep.subr.mxu0 0.0
    %2024 = vmatpush1.msra.mxu0 0.0
    %2025 = vmatprep.subr.mxu0 0.0
    %2026 = vmatpush1.msra.mxu0 0.0
    %2027 = vmatprep.subr.mxu0 0.0
    %2028 = vmatpush1.msra.mxu0 0.0
    %2029 = vmatprep.subr.mxu0 0.0
    %2030 = vmatpush1.msra.mxu0 0.0
    %2031 = vmatprep.subr.mxu0 0.0
    %2032 = vmatpush1.msra.mxu0 0.0
    %2033 = vmatprep.subr.mxu0 0.0
    %2034 = vmatpush1.msra.mxu0 0.0
    %2035 = vmatprep.subr.mxu0 0.0
    %2036 = vmatpush1.msra.mxu0 0.0
    %2037 = vmatprep.subr.mxu0 0.0
    %2038 = vmatpush1.msra.mxu0 0.0
    %2039 = vmatprep.subr.mxu0 0.0
    %2040 = vmatpush1.msra.mxu0 0.0
    %2041 = vmatprep.mubr.f32.mxu0 0.0
    %2042 = vmatmul.mubr.f32.gmra.mrb[0].mxu0 %v1895
    %v2043 = vpop.f32.mrb[0].mxu0
    %v2044 = vadd.f32 0.0, %v2043
    %v2045 = vpop.f32.mrb[0].mxu0
    %v2046 = vadd.f32 0.0, %v2045
    %2047 = vmatprep.mubr.f32.mxu0 0.0
    %2048 = vmatmul.mubr.f32.gmra.mrb[0].mxu0 %v1898
    %v2049 = vpop.f32.mrb[0].mxu0
    %v2050 = vadd.f32 0.0, %v2049
    %v2051 = vpop.f32.mrb[0].mxu0
    %v2052 = vadd.f32 0.0, %v2051
    %2053 = vdwg.mxu0
    %2054 = vmatprep.subr.mxu0 %v1871
    %2055 = vmatpush1.msra.mxu0 %v1870
    %2056 = vmatprep.subr.mxu0 %v1878
    %2057 = vmatpush1.msra.mxu0 %v1877
    %2058 = vmatprep.subr.mxu0 %v1885
    %2059 = vmatpush1.msra.mxu0 %v1884
    %2060 = vmatprep.subr.mxu0 %v1892
    %2061 = vmatpush1.msra.mxu0 %v1891
    %2062 = vmatprep.subr.mxu0 0.0
    %2063 = vmatpush1.msra.mxu0 0.0
    %2064 = vmatprep.subr.mxu0 0.0
    %2065 = vmatpush1.msra.mxu0 0.0
    %2066 = vmatprep.subr.mxu0 0.0
    %2067 = vmatpush1.msra.mxu0 0.0
    %2068 = vmatprep.subr.mxu0 0.0
    %2069 = vmatpush1.msra.mxu0 0.0
    %2070 = vmatprep.subr.mxu0 0.0
    %2071 = vmatpush1.msra.mxu0 0.0
    %2072 = vmatprep.subr.mxu0 0.0
    %2073 = vmatpush1.msra.mxu0 0.0
    %2074 = vmatprep.subr.mxu0 0.0
    %2075 = vmatpush1.msra.mxu0 0.0
    %2076 = vmatprep.subr.mxu0 0.0
    %2077 = vmatpush1.msra.mxu0 0.0
    %2078 = vmatprep.subr.mxu0 0.0
    %2079 = vmatpush1.msra.mxu0 0.0
    %2080 = vmatprep.subr.mxu0 0.0
    %2081 = vmatpush1.msra.mxu0 0.0
    %2082 = vmatprep.subr.mxu0 0.0
    %2083 = vmatpush1.msra.mxu0 0.0
    %2084 = vmatprep.subr.mxu0 0.0
    %2085 = vmatpush1.msra.mxu0 0.0
    %2086 = vmatprep.subr.mxu0 0.0
    %2087 = vmatpush1.msra.mxu0 0.0
    %2088 = vmatprep.subr.mxu0 0.0
    %2089 = vmatpush1.msra.mxu0 0.0
    %2090 = vmatprep.subr.mxu0 0.0
    %2091 = vmatpush1.msra.mxu0 0.0
    %2092 = vmatprep.subr.mxu0 0.0
    %2093 = vmatpush1.msra.mxu0 0.0
    %2094 = vmatprep.subr.mxu0 0.0
    %2095 = vmatpush1.msra.mxu0 0.0
    %2096 = vmatprep.subr.mxu0 0.0
    %2097 = vmatpush1.msra.mxu0 0.0
    %2098 = vmatprep.subr.mxu0 0.0
    %2099 = vmatpush1.msra.mxu0 0.0
    %2100 = vmatprep.subr.mxu0 0.0
    %2101 = vmatpush1.msra.mxu0 0.0
    %2102 = vmatprep.subr.mxu0 0.0
    %2103 = vmatpush1.msra.mxu0 0.0
    %2104 = vmatprep.subr.mxu0 0.0
    %2105 = vmatpush1.msra.mxu0 0.0
    %2106 = vmatprep.subr.mxu0 0.0
    %2107 = vmatpush1.msra.mxu0 0.0
    %2108 = vmatprep.subr.mxu0 0.0
    %2109 = vmatpush1.msra.mxu0 0.0
    %2110 = vmatprep.subr.mxu0 0.0
    %2111 = vmatpush1.msra.mxu0 0.0
    %2112 = vmatprep.subr.mxu0 0.0
    %2113 = vmatpush1.msra.mxu0 0.0
    %2114 = vmatprep.subr.mxu0 0.0
    %2115 = vmatpush1.msra.mxu0 0.0
    %2116 = vmatprep.subr.mxu0 0.0
    %2117 = vmatpush1.msra.mxu0 0.0
    %2118 = vmatprep.mubr.f32.mxu0 0.0
    %2119 = vmatmul.mubr.f32.gmra.mrb[0].mxu0 %v1895
    %v2120 = vpop.f32.mrb[0].mxu0
    %v2121 = vadd.f32 0.0, %v2120
    %v2122 = vpop.f32.mrb[0].mxu0
    %v2123 = vadd.f32 0.0, %v2122
    %2124 = vmatprep.mubr.f32.mxu0 0.0
    %2125 = vmatmul.mubr.f32.gmra.mrb[0].mxu0 %v1898
    %v2126 = vpop.f32.mrb[0].mxu0
    %v2127 = vadd.f32 0.0, %v2126
    %v2128 = vpop.f32.mrb[0].mxu0
    %v2129 = vadd.f32 0.0, %v2128
    %2130 = vdwg.mxu0
    %2131 = vmatprep.subr.mxu0 0.0
    %2132 = vmatpush1.msra.mxu0 %v1872
    %2133 = vmatprep.subr.mxu0 0.0
    %2134 = vmatpush1.msra.mxu0 %v1879
    %2135 = vmatprep.subr.mxu0 0.0
    %2136 = vmatpush1.msra.mxu0 %v1886
    %2137 = vmatprep.subr.mxu0 0.0
    %2138 = vmatpush1.msra.mxu0 %v1893
    %2139 = vmatprep.subr.mxu0 0.0
    %2140 = vmatpush1.msra.mxu0 0.0
    %2141 = vmatprep.subr.mxu0 0.0
    %2142 = vmatpush1.msra.mxu0 0.0
    %2143 = vmatprep.subr.mxu0 0.0
    %2144 = vmatpush1.msra.mxu0 0.0
    %2145 = vmatprep.subr.mxu0 0.0
    %2146 = vmatpush1.msra.mxu0 0.0
    %2147 = vmatprep.subr.mxu0 0.0
    %2148 = vmatpush1.msra.mxu0 0.0
    %2149 = vmatprep.subr.mxu0 0.0
    %2150 = vmatpush1.msra.mxu0 0.0
    %2151 = vmatprep.subr.mxu0 0.0
    %2152 = vmatpush1.msra.mxu0 0.0
    %2153 = vmatprep.subr.mxu0 0.0
    %2154 = vmatpush1.msra.mxu0 0.0
    %2155 = vmatprep.subr.mxu0 0.0
    %2156 = vmatpush1.msra.mxu0 0.0
    %2157 = vmatprep.subr.mxu0 0.0
    %2158 = vmatpush1.msra.mxu0 0.0
    %2159 = vmatprep.subr.mxu0 0.0
    %2160 = vmatpush1.msra.mxu0 0.0
    %2161 = vmatprep.subr.mxu0 0.0
    %2162 = vmatpush1.msra.mxu0 0.0
    %2163 = vmatprep.subr.mxu0 0.0
    %2164 = vmatpush1.msra.mxu0 0.0
    %2165 = vmatprep.subr.mxu0 0.0
    %2166 = vmatpush1.msra.mxu0 0.0
    %2167 = vmatprep.subr.mxu0 0.0
    %2168 = vmatpush1.msra.mxu0 0.0
    %2169 = vmatprep.subr.mxu0 0.0
    %2170 = vmatpush1.msra.mxu0 0.0
    %2171 = vmatprep.subr.mxu0 0.0
    %2172 = vmatpush1.msra.mxu0 0.0
    %2173 = vmatprep.subr.mxu0 0.0
    %2174 = vmatpush1.msra.mxu0 0.0
    %2175 = vmatprep.subr.mxu0 0.0
    %2176 = vmatpush1.msra.mxu0 0.0
    %2177 = vmatprep.subr.mxu0 0.0
    %2178 = vmatpush1.msra.mxu0 0.0
    %2179 = vmatprep.subr.mxu0 0.0
    %2180 = vmatpush1.msra.mxu0 0.0
    %2181 = vmatprep.subr.mxu0 0.0
    %2182 = vmatpush1.msra.mxu0 0.0
    %2183 = vmatprep.subr.mxu0 0.0
    %2184 = vmatpush1.msra.mxu0 0.0
    %2185 = vmatprep.subr.mxu0 0.0
    %2186 = vmatpush1.msra.mxu0 0.0
    %2187 = vmatprep.subr.mxu0 0.0
    %2188 = vmatpush1.msra.mxu0 0.0
    %2189 = vmatprep.subr.mxu0 0.0
    %2190 = vmatpush1.msra.mxu0 0.0
    %2191 = vmatprep.subr.mxu0 0.0
    %2192 = vmatpush1.msra.mxu0 0.0
    %2193 = vmatprep.subr.mxu0 0.0
    %2194 = vmatpush1.msra.mxu0 0.0
    %2195 = vmatprep.mubr.f32.mxu0 0.0
    %2196 = vmatmul.mubr.f32.gmra.mrb[0].mxu0 %v1895
    %v2197 = vpop.f32.mrb[0].mxu0
    %v2198 = vadd.f32 0.0, %v2197
    %v2199 = vpop.f32.mrb[0].mxu0
    %2200 = vmatprep.mubr.f32.mxu0 0.0
    %2201 = vmatmul.mubr.f32.gmra.mrb[0].mxu0 %v1898
    %v2202 = vpop.f32.mrb[0].mxu0
    %v2203 = vadd.f32 0.0, %v2202
    %v2204 = vpop.f32.mrb[0].mxu0
    %2205 = vdwg.mxu0
    %2206 = vmatprep.subr.mxu0 0.0
    %2207 = vmatpush1.msra.mxu0 %v1967
    %2208 = vmatprep.subr.mxu0 0.0
    %2209 = vmatpush1.msra.mxu0 %v1973
    %2210 = vmatprep.subr.mxu0 0.0
    %2211 = vmatpush1.msra.mxu0 %v1969
    %2212 = vmatprep.subr.mxu0 0.0
    %2213 = vmatpush1.msra.mxu0 %v1975
    %2214 = vmatprep.subr.mxu0 0.0
    %2215 = vmatpush1.msra.mxu0 %v2044
    %2216 = vmatprep.subr.mxu0 0.0
    %2217 = vmatpush1.msra.mxu0 %v2050
    %2218 = vmatprep.subr.mxu0 0.0
    %2219 = vmatpush1.msra.mxu0 %v2046
    %2220 = vmatprep.subr.mxu0 0.0
    %2221 = vmatpush1.msra.mxu0 %v2052
    %2222 = vmatprep.subr.mxu0 0.0
    %2223 = vmatpush1.msra.mxu0 %v2121
    %2224 = vmatprep.subr.mxu0 0.0
    %2225 = vmatpush1.msra.mxu0 %v2127
    %2226 = vmatprep.subr.mxu0 0.0
    %2227 = vmatpush1.msra.mxu0 %v2123
    %2228 = vmatprep.subr.mxu0 0.0
    %2229 = vmatpush1.msra.mxu0 %v2129
    %2230 = vmatprep.subr.mxu0 0.0
    %2231 = vmatpush1.msra.mxu0 %v2198
    %2232 = vmatprep.subr.mxu0 0.0
    %2233 = vmatpush1.msra.mxu0 %v2203
    %2234 = vmatprep.subr.mxu0 0.0
    %2235 = vmatpush1.msra.mxu0 0.0
    %2236 = vmatprep.subr.mxu0 0.0
    %2237 = vmatpush1.msra.mxu0 0.0
    %2238 = vmatprep.subr.mxu0 0.0
    %2239 = vmatpush1.msra.mxu0 0.0
    %2240 = vmatprep.subr.mxu0 0.0
    %2241 = vmatpush1.msra.mxu0 0.0
    %2242 = vmatprep.subr.mxu0 0.0
    %2243 = vmatpush1.msra.mxu0 0.0
    %2244 = vmatprep.subr.mxu0 0.0
    %2245 = vmatpush1.msra.mxu0 0.0
    %2246 = vmatprep.subr.mxu0 0.0
    %2247 = vmatpush1.msra.mxu0 0.0
    %2248 = vmatprep.subr.mxu0 0.0
    %2249 = vmatpush1.msra.mxu0 0.0
    %2250 = vmatprep.subr.mxu0 0.0
    %2251 = vmatpush1.msra.mxu0 0.0
    %2252 = vmatprep.subr.mxu0 0.0
    %2253 = vmatpush1.msra.mxu0 0.0
    %2254 = vmatprep.subr.mxu0 0.0
    %2255 = vmatpush1.msra.mxu0 0.0
    %2256 = vmatprep.subr.mxu0 0.0
    %2257 = vmatpush1.msra.mxu0 0.0
    %2258 = vmatprep.subr.mxu0 0.0
    %2259 = vmatpush1.msra.mxu0 0.0
    %2260 = vmatprep.subr.mxu0 0.0
    %2261 = vmatpush1.msra.mxu0 0.0
    %2262 = vmatprep.subr.mxu0 0.0
    %2263 = vmatpush1.msra.mxu0 0.0
    %2264 = vmatprep.subr.mxu0 0.0
    %2265 = vmatpush1.msra.mxu0 0.0
    %2266 = vmatprep.subr.mxu0 0.0
    %2267 = vmatpush1.msra.mxu0 0.0
    %2268 = vmatprep.subr.mxu0 0.0
    %2269 = vmatpush1.msra.mxu0 0.0
    %2270 = vmatprep.mubr.f32.mxu0 0.0
    %2271 = vmatmul.mubr.f32.gmra.mrb[0].mxu0 %v409
    %v2272 = vpop.f32.mrb[0].mxu0
    %v2273 = vadd.f32 0.0, %v2272
    %v2274 = vpop.f32.mrb[0].mxu0
    %2275 = vmatprep.mubr.f32.mxu0 0.0
    %2276 = vmatmul.mubr.f32.gmra.mrb[0].mxu0 %v412
    %v2277 = vpop.f32.mrb[0].mxu0
    %v2278 = vadd.f32 0.0, %v2277
    %v2279 = vpop.f32.mrb[0].mxu0
    %2280 = vdwg.mxu0
    %s2281 = scalar_lea.vmem %s4, 12
    %v2282 = vld [vmem:[%s2281] sm:$0xf]
    %v2283 = vmul.f32 %v2273, %v2273
    %v2284 = vmul.f32 %v2278, %v2278
    %v2285 = vsel %vm94, %v2273, 0.0
    %2286 = vadd.xlane.f32.xlu0 %v2285
    %v2287 = vpop.xlane.xlu0 %2286
    %v2288 = vsel %vm94, %v2278, 0.0
    %2289 = vadd.xlane.f32.xlu0 %v2288
    %v2290 = vpop.xlane.xlu0 %2289
    %v2291 = vsel %vm94, %v2283, 0.0
    %2292 = vadd.xlane.f32.xlu0 %v2291
    %v2293 = vpop.xlane.xlu0 %2292
    %v2294 = vsel %vm94, %v2284, 0.0
    %2295 = vadd.xlane.f32.xlu0 %v2294
    %v2296 = vpop.xlane.xlu0 %2295
    %v2297 = vmul.f32 %v2287, 0.03125
    %v2298 = vmul.f32 %v2290, 0.03125
    %v2299 = vmul.f32 %v2293, 0.03125
    %v2300 = vmul.f32 %v2296, 0.03125
    %v2301 = vmul.f32 %v2297, %v2297
    %v2302 = vmul.f32 %v2298, %v2298
    %v2303 = vsub.f32 %v2299, %v2301
    %v2304 = vsub.f32 %v2300, %v2302
    %v2305 = vmax.f32 %v2303, 0.0
    %v2306 = vmax.f32 %v2304, 0.0
    %v2307 = vsub.f32 %v2273, %v2297
    %v2308 = vsub.f32 %v2278, %v2298
    %v2309 = vadd.f32 %v2305, 1e-05
    %v2310 = vadd.f32 %v2306, 1e-05
    %v2311 = vrsqrt.pop %v2309
    %v2312 = vrsqrt.pop %v2310
    %v2313 = vmul.f32 %v2307, %v2311
    %v2314 = vmul.f32 %v2308, %v2312
    %v2315 = vlaneseq
    %v2316 = vshrl.u32 %v2315, 7
    %v2317 = vsub.s32 0, %v2316
    %v2318 = vrot.slane %v2282, %v2317
    %v2319 = vmul.f32 %v2313, %v2318
    %v2320 = vmul.f32 %v2314, %v2318
    %v2321 = vlaneseq
    %v2322 = vshrl.u32 %v2321, 7
    %v2323 = vsub.s32 1, %v2322
    %v2324 = vrot.slane %v2282, %v2323
    %v2325 = vadd.f32 %v2319, %v2324
    %v2326 = vadd.f32 %v2320, %v2324
    %v2327 = vmax.f32 %v2325, 0.0
    %v2328 = vmax.f32 %v2326, 0.0
    %s2329 = scalar_lea.vmem [#allocation7], 96
    %v2330 = vld [vmem:[%s2329] sm:$0xff]
    %v2331 = vld [vmem:[%s2329 + $0x8] sm:$0xff]
    %v2332 = vld [vmem:[%s2329 + $0x10] sm:$0xff]
    %v2333 = vld [vmem:[%s2329 + $0x18] sm:$0xff]
    %v2335 = vsel %vm94, %v2327, 0
    %v2338 = vsel %vm94, %v2328, 0
    %2340 = vmatprep.subr.mxu0 0.0
    %2341 = vmatpush1.msra.mxu0 %v2330
    %2342 = vmatprep.subr.mxu0 0.0
    %2343 = vmatpush1.msra.mxu0 %v2331
    %2344 = vmatprep.subr.mxu0 0.0
    %2345 = vmatpush1.msra.mxu0 %v2332
    %2346 = vmatprep.subr.mxu0 0.0
    %2347 = vmatpush1.msra.mxu0 %v2333
    %2348 = vmatprep.subr.mxu0 0.0
    %2349 = vmatpush1.msra.mxu0 0.0
    %2350 = vmatprep.subr.mxu0 0.0
    %2351 = vmatpush1.msra.mxu0 0.0
    %2352 = vmatprep.subr.mxu0 0.0
    %2353 = vmatpush1.msra.mxu0 0.0
    %2354 = vmatprep.subr.mxu0 0.0
    %2355 = vmatpush1.msra.mxu0 0.0
    %2356 = vmatprep.subr.mxu0 0.0
    %2357 = vmatpush1.msra.mxu0 0.0
    %2358 = vmatprep.subr.mxu0 0.0
    %2359 = vmatpush1.msra.mxu0 0.0
    %2360 = vmatprep.subr.mxu0 0.0
    %2361 = vmatpush1.msra.mxu0 0.0
    %2362 = vmatprep.subr.mxu0 0.0
    %2363 = vmatpush1.msra.mxu0 0.0
    %2364 = vmatprep.subr.mxu0 0.0
    %2365 = vmatpush1.msra.mxu0 0.0
    %2366 = vmatprep.subr.mxu0 0.0
    %2367 = vmatpush1.msra.mxu0 0.0
    %2368 = vmatprep.subr.mxu0 0.0
    %2369 = vmatpush1.msra.mxu0 0.0
    %2370 = vmatprep.subr.mxu0 0.0
    %2371 = vmatpush1.msra.mxu0 0.0
    %2372 = vmatprep.subr.mxu0 0.0
    %2373 = vmatpush1.msra.mxu0 0.0
    %2374 = vmatprep.subr.mxu0 0.0
    %2375 = vmatpush1.msra.mxu0 0.0
    %2376 = vmatprep.subr.mxu0 0.0
    %2377 = vmatpush1.msra.mxu0 0.0
    %2378 = vmatprep.subr.mxu0 0.0
    %2379 = vmatpush1.msra.mxu0 0.0
    %2380 = vmatprep.subr.mxu0 0.0
    %2381 = vmatpush1.msra.mxu0 0.0
    %2382 = vmatprep.subr.mxu0 0.0
    %2383 = vmatpush1.msra.mxu0 0.0
    %2384 = vmatprep.subr.mxu0 0.0
    %2385 = vmatpush1.msra.mxu0 0.0
    %2386 = vmatprep.subr.mxu0 0.0
    %2387 = vmatpush1.msra.mxu0 0.0
    %2388 = vmatprep.subr.mxu0 0.0
    %2389 = vmatpush1.msra.mxu0 0.0
    %2390 = vmatprep.subr.mxu0 0.0
    %2391 = vmatpush1.msra.mxu0 0.0
    %2392 = vmatprep.subr.mxu0 0.0
    %2393 = vmatpush1.msra.mxu0 0.0
    %2394 = vmatprep.subr.mxu0 0.0
    %2395 = vmatpush1.msra.mxu0 0.0
    %2396 = vmatprep.subr.mxu0 0.0
    %2397 = vmatpush1.msra.mxu0 0.0
    %2398 = vmatprep.subr.mxu0 0.0
    %2399 = vmatpush1.msra.mxu0 0.0
    %2400 = vmatprep.subr.mxu0 0.0
    %2401 = vmatpush1.msra.mxu0 0.0
    %2402 = vmatprep.subr.mxu0 0.0
    %2403 = vmatpush1.msra.mxu0 0.0
    %2404 = vmatprep.mubr.f32.mxu0 0.0
    %2405 = vmatmul.mubr.f32.gmra.mrb[0].mxu0 %v2335
    %v2406 = vpop.f32.mrb[0].mxu0
    %v2407 = vadd.f32 0.0, %v2406
    %v2408 = vpop.f32.mrb[0].mxu0
    %2409 = vmatprep.mubr.f32.mxu0 0.0
    %2410 = vmatmul.mubr.f32.gmra.mrb[0].mxu0 %v2338
    %v2411 = vpop.f32.mrb[0].mxu0
    %v2412 = vadd.f32 0.0, %v2411
    %v2413 = vpop.f32.mrb[0].mxu0
    %2414 = vdwg.mxu0
    %v2415 = vmul.f32 %v2407, %v2407
    %v2416 = vmul.f32 %v2412, %v2412
    %v2417 = vsel %vm94, %v2407, 0.0
    %2418 = vadd.xlane.f32.xlu0 %v2417
    %v2419 = vpop.xlane.xlu0 %2418
    %v2420 = vsel %vm94, %v2412, 0.0
    %2421 = vadd.xlane.f32.xlu0 %v2420
    %v2422 = vpop.xlane.xlu0 %2421
    %v2423 = vsel %vm94, %v2415, 0.0
    %2424 = vadd.xlane.f32.xlu0 %v2423
    %v2425 = vpop.xlane.xlu0 %2424
    %v2426 = vsel %vm94, %v2416, 0.0
    %2427 = vadd.xlane.f32.xlu0 %v2426
    %v2428 = vpop.xlane.xlu0 %2427
    %v2429 = vmul.f32 %v2419, 0.03125
    %v2430 = vmul.f32 %v2422, 0.03125
    %v2431 = vmul.f32 %v2425, 0.03125
    %v2432 = vmul.f32 %v2428, 0.03125
    %v2433 = vmul.f32 %v2429, %v2429
    %v2434 = vmul.f32 %v2430, %v2430
    %v2435 = vsub.f32 %v2431, %v2433
    %v2436 = vsub.f32 %v2432, %v2434
    %v2437 = vmax.f32 %v2435, 0.0
    %v2438 = vmax.f32 %v2436, 0.0
    %v2439 = vsub.f32 %v2407, %v2429
    %v2440 = vsub.f32 %v2412, %v2430
    %v2441 = vadd.f32 %v2437, 1e-05
    %v2442 = vadd.f32 %v2438, 1e-05
    %v2443 = vrsqrt.pop %v2441
    %v2444 = vrsqrt.pop %v2442
    %v2445 = vmul.f32 %v2439, %v2443
    %v2446 = vmul.f32 %v2440, %v2444
    %v2447 = vlaneseq
    %v2448 = vshrl.u32 %v2447, 7
    %v2449 = vsub.s32 2, %v2448
    %v2450 = vrot.slane %v2282, %v2449
    %v2451 = vmul.f32 %v2445, %v2450
    %v2452 = vmul.f32 %v2446, %v2450
    %v2453 = vlaneseq
    %v2454 = vshrl.u32 %v2453, 7
    %v2455 = vsub.s32 3, %v2454
    %v2456 = vrot.slane %v2282, %v2455
    %v2457 = vadd.f32 %v2451, %v2456
    %v2458 = vadd.f32 %v2452, %v2456
    %v2459 = vadd.f32 %v2457, %v1863
    %v2460 = vadd.f32 %v2458, %v1864
    %v2461 = vmax.f32 %v2459, 0.0
    %v2462 = vmax.f32 %v2460, 0.0
    %2463 = vst.msk [vmem:[#allocation8] sm:$0xff] %vm94, %v2461
    %2464 = vst.msk [vmem:[#allocation8 + $0x8] sm:$0xff] %vm94, %v2462
    // Predicated region
    $region34: #{m2m_apply.1} parent=1 // pred_check
      _
    $region35: #{m2m_apply.1} parent=1 // pred_check_branch
      %2466 = sbr.rel (0) target = $region37
    $region36: #{m2m_apply.1} parent=1 // pred_region
      %s2468 = ssub.s32 256, 256
      %2469 = vsyncadd [#allocation4], %s2468
      %s2470 = sshll.u32 [#allocation8], 4
      %s2471 = int_to_ptr.vmem [resolvable:$true] %s2470
      %2476 = dma.vmem_to_hbm [thread:$0]  %s2471, 256, %s5, [#allocation4], 128, 128, 8
    $region37: #{m2m_apply.1} parent=1 // pred_fallthru
      _
    // Predicated region
    $region38: #{m2m_apply.1} parent=1 // pred_check
      _
    $region39: #{m2m_apply.1} parent=1 // pred_check_branch
      %2478 = sbr.rel (0) target = $region41
    $region40: #{m2m_apply.1} parent=1 // pred_region
      %2479 = dma.done [#allocation4], 256
    $region41: #{m2m_apply.1} parent=1 // pred_fallthru
      _
    %2480 = vsyncpa [#allocation3], 1
    %2481 = vsyncpa [#allocation6], 1
    %2482 = vsyncpa [#allocation4], 1

</llo_original>
